<compile_context>
chip_gen: v6e
topology: v6e:2x2x1
jax: 0.10.0
libtpu: 0.0.40
codegen_flags: <defaults>
</compile_context>

<pallas_src>
import functools

import jax
import jax.numpy as jnp
from jax import lax
from jax.experimental import pallas as pl
from jax.experimental.pallas import tpu as pltpu

# ----------------------- tiny synthetic BERT config -------------------------
VOCAB = 100
VOCAB_PAD = 128        # lane-aligned embedding-table height (rows >= VOCAB unused)
HIDDEN = 32
N_HEADS = 4
HEAD_DIM = HIDDEN // N_HEADS
N_LAYERS = 2
INTERMEDIATE = 64
MAX_POS = 64
N_CLASSES = 5
CLS_PAD = 128          # lane-dense classifier width (sliced back to N_CLASSES)
LN_EPS = 1e-12
DROPOUT_P = 0.3
DROP_THRESH = int(DROPOUT_P * (1 << 32))   # uint32 threshold for dropout


# --------------------------- in-kernel helpers -------------------------------
def _layernorm(x, g, b):
    mu = jnp.mean(x, axis=-1, keepdims=True)
    var = jnp.mean((x - mu) * (x - mu), axis=-1, keepdims=True)
    return (x - mu) * lax.rsqrt(var + LN_EPS) * g + b


def _gelu(y):
    # TODO(synk): HF BERT default is exact erf GELU; tanh approximation used here.
    c = jnp.float32(0.7978845608028654)
    return 0.5 * y * (1.0 + jnp.tanh(c * (y + 0.044715 * y * y * y)))


def _softmax_rows(s):
    s = s - jnp.max(s, axis=-1, keepdims=True)
    p = jnp.exp(s)
    return p * pl.reciprocal(jnp.sum(p, axis=-1, keepdims=True), approx=True)


# ------------------------------ fused kernel ---------------------------------
def _classifier_kernel(ids_ref, pos_ref, bias_ref,
                       wemb_ref, pemb_ref, type_ref,
                       emb_g_ref, emb_b_ref,
                       wqkv_ref, bqkv_ref, wo_ref, bo_ref,
                       ln1g_ref, ln1b_ref, w1_ref, b1_ref,
                       w2_ref, b2_ref, ln2g_ref, ln2b_ref,
                       wp_ref, bp_ref, wc_ref, bc_ref,
                       *rest, batch, seq, b_pad, training):
    # rest = (seed_ref, o_ref) when training else (o_ref,)
    if training:
        seed_ref, o_ref = rest
    else:
        (o_ref,) = rest

    f32, bf16 = jnp.float32, jnp.bfloat16
    R = batch * seq                                   # total token rows

    # ---- embeddings: one-hot matmul gather, fully in VMEM ----
    vcol = lax.broadcasted_iota(jnp.int32, (1, VOCAB_PAD), 1)
    wone = (ids_ref[...] == vcol).astype(bf16)        # (R, VOCAB_PAD)
    x = jnp.dot(wone, wemb_ref[...], preferred_element_type=f32)

    pcol = lax.broadcasted_iota(jnp.int32, (1, MAX_POS), 1)
    pone = (pos_ref[...] == pcol).astype(bf16)        # (R, MAX_POS)
    x = x + jnp.dot(pone, pemb_ref[...], preferred_element_type=f32)

    x = x + type_ref[...]                             # token_type_ids == 0
    x = _layernorm(x, emb_g_ref[...], emb_b_ref[...])

    # ---- loop-invariant attention constructs ----
    col = lax.broadcasted_iota(jnp.int32, (1, HIDDEN), 1)
    head_masks = [
        jnp.logical_and(col >= h * HEAD_DIM, col < (h + 1) * HEAD_DIM)
        for h in range(N_HEADS)
    ]
    # additive bias (key padding + block-diagonal batch mask), tiled per head
    bias_stack = jnp.concatenate([bias_ref[...]] * N_HEADS, axis=0)  # (NH*R, R)
    scale = f32(1.0 / (HEAD_DIM ** 0.5))

    for l in range(N_LAYERS):                         # static unroll
        xb = x.astype(bf16)
        qkv = jnp.dot(xb, wqkv_ref[l], preferred_element_type=f32) + bqkv_ref[l]
        q = qkv[:, 0 * HIDDEN:1 * HIDDEN]
        k = qkv[:, 1 * HIDDEN:2 * HIDDEN].astype(bf16)
        v = qkv[:, 2 * HIDDEN:3 * HIDDEN].astype(bf16)

        # stacked-head attention: one score matmul, one softmax, one PV matmul
        q_stack = jnp.concatenate(
            [jnp.where(hm, q, 0.0) for hm in head_masks], axis=0)   # (NH*R, H)
        s = lax.dot_general(q_stack.astype(bf16), k,
                            (((1,), (1,)), ((), ())),
                            preferred_element_type=f32) * scale + bias_stack
        p = _softmax_rows(s)                                         # (NH*R, R)
        ctx_all = jnp.dot(p.astype(bf16), v, preferred_element_type=f32)
        ctx = jnp.where(head_masks[0], ctx_all[0:R], 0.0)
        for h in range(1, N_HEADS):
            ctx = ctx + jnp.where(head_masks[h],
                                  ctx_all[h * R:(h + 1) * R], 0.0)

        attn = jnp.dot(ctx.astype(bf16), wo_ref[l],
                       preferred_element_type=f32) + bo_ref[l]
        x = _layernorm(attn + x, ln1g_ref[l], ln1b_ref[l])

        h1 = _gelu(jnp.dot(x.astype(bf16), w1_ref[l],
                           preferred_element_type=f32) + b1_ref[l])
        ffn = jnp.dot(h1.astype(bf16), w2_ref[l],
                      preferred_element_type=f32) + b2_ref[l]
        x = _layernorm(ffn + x, ln2g_ref[l], ln2b_ref[l])

    # ---- BERT pooler on [CLS] rows (row b*seq), padded to b_pad sublanes ----
    prow = lax.broadcasted_iota(jnp.int32, (b_pad, 1), 0)
    xcol = lax.broadcasted_iota(jnp.int32, (1, R), 1)
    sel = jnp.logical_and(xcol == prow * seq, prow < batch).astype(bf16)
    cls = jnp.dot(sel, x.astype(bf16), preferred_element_type=f32)   # (b_pad, H)
    pooled = jnp.tanh(jnp.dot(cls.astype(bf16), wp_ref[...],
                              preferred_element_type=f32) + bp_ref[...])

    # nn.Dropout(p=0.3): identity in eval; TPU hardware PRNG when training
    if training:
        pltpu.prng_seed(seed_ref[0])
        bits = pltpu.bitcast(pltpu.prng_random_bits(pooled.shape), jnp.uint32)
        keep = (bits >= jnp.uint32(DROP_THRESH)).astype(f32)
        pooled = pooled * keep * f32(1.0 / (1.0 - DROPOUT_P))

    # classifier head; one dense (b_pad, CLS_PAD) store
    o_ref[...] = (jnp.dot(pooled.astype(bf16), wc_ref[...],
                          preferred_element_type=f32) + bc_ref[...])


# --------------------------- parameter init ----------------------------------
def init_params(key):
    ks = jax.random.split(key, 9)
    nbf = lambda k, shape: (jax.random.normal(k, shape, jnp.float32)
                            * 0.02).astype(jnp.bfloat16)
    wc = jnp.zeros((HIDDEN, CLS_PAD), jnp.float32)
    wc = wc.at[:, :N_CLASSES].set(
        jax.random.normal(ks[8], (HIDDEN, N_CLASSES), jnp.float32) * 0.02)
    return {
        "word_emb": nbf(ks[0], (VOCAB_PAD, HIDDEN)),
        "pos_emb": nbf(ks[1], (MAX_POS, HIDDEN)),
        "type_row": (jax.random.normal(ks[2], (1, HIDDEN), jnp.float32) * 0.02),
        "emb_ln_g": jnp.ones((1, HIDDEN), jnp.float32),
        "emb_ln_b": jnp.zeros((1, HIDDEN), jnp.float32),
        "wqkv": nbf(ks[3], (N_LAYERS, HIDDEN, 3 * HIDDEN)),
        "bqkv": jnp.zeros((N_LAYERS, 1, 3 * HIDDEN), jnp.float32),
        "wo": nbf(ks[4], (N_LAYERS, HIDDEN, HIDDEN)),
        "bo": jnp.zeros((N_LAYERS, 1, HIDDEN), jnp.float32),
        "ln1_g": jnp.ones((N_LAYERS, 1, HIDDEN), jnp.float32),
        "ln1_b": jnp.zeros((N_LAYERS, 1, HIDDEN), jnp.float32),
        "w1": nbf(ks[5], (N_LAYERS, HIDDEN, INTERMEDIATE)),
        "b1": jnp.zeros((N_LAYERS, 1, INTERMEDIATE), jnp.float32),
        "w2": nbf(ks[6], (N_LAYERS, INTERMEDIATE, HIDDEN)),
        "b2": jnp.zeros((N_LAYERS, 1, HIDDEN), jnp.float32),
        "ln2_g": jnp.ones((N_LAYERS, 1, HIDDEN), jnp.float32),
        "ln2_b": jnp.zeros((N_LAYERS, 1, HIDDEN), jnp.float32),
        "wp": nbf(ks[7], (HIDDEN, HIDDEN)),
        "bp": jnp.zeros((1, HIDDEN), jnp.float32),
        "wc": wc.astype(jnp.bfloat16),
        "bc": jnp.zeros((1, CLS_PAD), jnp.float32),
    }


_WEIGHT_NAMES = ("word_emb", "pos_emb", "type_row",
                 "emb_ln_g", "emb_ln_b",
                 "wqkv", "bqkv", "wo", "bo",
                 "ln1_g", "ln1_b", "w1", "b1", "w2", "b2",
                 "ln2_g", "ln2_b", "wp", "bp", "wc", "bc")


# ------------------------------ forward --------------------------------------
def language_classifier_forward(params, input_ids, attention_mask,
                                training=False, seed=0):
    B, S = input_ids.shape
    R = B * S
    B_PAD = max(8, ((B + 7) // 8) * 8)               # sublane-dense output rows

    ids = input_ids.reshape(R, 1).astype(jnp.int32)
    pos_ids = jnp.tile(jnp.arange(S, dtype=jnp.int32), B).reshape(R, 1)

    # additive attention bias: key-padding (-1e4, matches HF) + block-diagonal
    # batch mask (-1e9) so tokens never attend across batch elements.
    qb = (jnp.arange(R, dtype=jnp.int32) // S)
    same = qb[:, None] == qb[None, :]
    keypad = attention_mask.reshape(-1) > 0
    bias = jnp.where(same,
                     jnp.where(keypad[None, :], 0.0, -10000.0),
                     -1e9).astype(jnp.float32)       # (R, R)

    weights = [params[name] for name in _WEIGHT_NAMES]
    args = [ids, pos_ids, bias] + weights
    in_specs = [pl.BlockSpec(memory_space=pltpu.MemorySpace.VMEM)] * len(args)

    if training:
        in_specs.append(pl.BlockSpec(memory_space=pltpu.MemorySpace.SMEM))
        args.append(jnp.asarray([seed], jnp.int32))

    kernel = functools.partial(_classifier_kernel,
                               batch=B, seq=S, b_pad=B_PAD, training=training)
    logits_pad = pl.pallas_call(
        kernel,
        out_shape=jax.ShapeDtypeStruct((B_PAD, CLS_PAD), jnp.float32),
        in_specs=in_specs,
        out_specs=pl.BlockSpec(memory_space=pltpu.MemorySpace.VMEM),
    )(*args)

    return logits_pad[:B, :N_CLASSES]


# -------------------------------- main ---------------------------------------
if __name__ == "__main__":
    key = jax.random.PRNGKey(0)
    pkey, ikey = jax.random.split(key)
    params = init_params(pkey)

    B, S = 2, 8
    input_ids = jax.random.randint(ikey, (B, S), 0, VOCAB, dtype=jnp.int32)
    attention_mask = jnp.ones((B, S), jnp.int32).at[1, 6:].set(0)  # padded tail

    fwd = jax.jit(lambda p, ids, m: language_classifier_forward(
        p, ids, m, training=False))
    logits = fwd(params, input_ids, attention_mask)
    jax.block_until_ready(logits)
    assert logits.shape == (B, N_CLASSES) and logits.dtype == jnp.float32
    assert bool(jnp.all(jnp.isfinite(logits)))
    print("KERNEL_OK")
</pallas_src>

<mosaic_0001>
module attributes {stable_mosaic.version = 11 : i64} {
  func.func @_classifier_kernel(%arg0: memref<16x1xi32, #tpu.memory_space<vmem>>, %arg1: memref<16x1xi32, #tpu.memory_space<vmem>>, %arg2: memref<16x16xf32, #tpu.memory_space<vmem>>, %arg3: memref<128x32xbf16, #tpu.memory_space<vmem>>, %arg4: memref<64x32xbf16, #tpu.memory_space<vmem>>, %arg5: memref<1x32xf32, #tpu.memory_space<vmem>>, %arg6: memref<1x32xf32, #tpu.memory_space<vmem>>, %arg7: memref<1x32xf32, #tpu.memory_space<vmem>>, %arg8: memref<2x32x96xbf16, #tpu.memory_space<vmem>>, %arg9: memref<2x1x96xf32, #tpu.memory_space<vmem>>, %arg10: memref<2x32x32xbf16, #tpu.memory_space<vmem>>, %arg11: memref<2x1x32xf32, #tpu.memory_space<vmem>>, %arg12: memref<2x1x32xf32, #tpu.memory_space<vmem>>, %arg13: memref<2x1x32xf32, #tpu.memory_space<vmem>>, %arg14: memref<2x32x64xbf16, #tpu.memory_space<vmem>>, %arg15: memref<2x1x64xf32, #tpu.memory_space<vmem>>, %arg16: memref<2x64x32xbf16, #tpu.memory_space<vmem>>, %arg17: memref<2x1x32xf32, #tpu.memory_space<vmem>>, %arg18: memref<2x1x32xf32, #tpu.memory_space<vmem>>, %arg19: memref<2x1x32xf32, #tpu.memory_space<vmem>>, %arg20: memref<32x32xbf16, #tpu.memory_space<vmem>>, %arg21: memref<1x32xf32, #tpu.memory_space<vmem>>, %arg22: memref<32x128xbf16, #tpu.memory_space<vmem>>, %arg23: memref<1x128xf32, #tpu.memory_space<vmem>>, %arg24: memref<8x128xf32, #tpu.memory_space<vmem>>) attributes {dimension_semantics = [], scalar_prefetch = 0 : i64, scratch_operands = 0 : i64, tpu.core_type = #tpu.core_type<tc>} {
    %0 = tpu.iota {dimensions = array<i32: 1>} : vector<1x128xi32>
    %c0 = arith.constant 0 : index
    %c0_0 = arith.constant 0 : index
    %1 = vector.load %arg0[%c0, %c0_0] : memref<16x1xi32, #tpu.memory_space<vmem>>, vector<16x1xi32>
    %2 = vector.broadcast %1 : vector<16x1xi32> to vector<16x128xi32>
    %3 = vector.broadcast %0 : vector<1x128xi32> to vector<16x128xi32>
    %4 = arith.cmpi eq, %2, %3 : vector<16x128xi32>
    %5 = arith.extui %4 : vector<16x128xi1> to vector<16x128xi32>
    %6 = arith.sitofp %5 : vector<16x128xi32> to vector<16x128xf32>
    %7 = arith.truncf %6 : vector<16x128xf32> to vector<16x128xbf16>
    %c0_1 = arith.constant 0 : index
    %c0_2 = arith.constant 0 : index
    %8 = vector.load %arg3[%c0_1, %c0_2] : memref<128x32xbf16, #tpu.memory_space<vmem>>, vector<128x32xbf16>
    %cst = arith.constant dense<0.000000e+00> : vector<16x32xf32>
    %9 = tpu.matmul %7, %8, %cst {dimension_numbers = #tpu.dot_dimension_numbers<[1], [0], [0], [1], [0, 0, 1, 1], [], []>} : vector<16x128xbf16>, vector<128x32xbf16>, vector<16x32xf32> -> vector<16x32xf32>
    %10 = tpu.iota {dimensions = array<i32: 1>} : vector<1x64xi32>
    %c0_3 = arith.constant 0 : index
    %c0_4 = arith.constant 0 : index
    %11 = vector.load %arg1[%c0_3, %c0_4] : memref<16x1xi32, #tpu.memory_space<vmem>>, vector<16x1xi32>
    %12 = vector.broadcast %11 : vector<16x1xi32> to vector<16x64xi32>
    %13 = vector.broadcast %10 : vector<1x64xi32> to vector<16x64xi32>
    %14 = arith.cmpi eq, %12, %13 : vector<16x64xi32>
    %15 = arith.extui %14 : vector<16x64xi1> to vector<16x64xi32>
    %16 = arith.sitofp %15 : vector<16x64xi32> to vector<16x64xf32>
    %17 = arith.truncf %16 : vector<16x64xf32> to vector<16x64xbf16>
    %c0_5 = arith.constant 0 : index
    %c0_6 = arith.constant 0 : index
    %18 = vector.load %arg4[%c0_5, %c0_6] : memref<64x32xbf16, #tpu.memory_space<vmem>>, vector<64x32xbf16>
    %cst_7 = arith.constant dense<0.000000e+00> : vector<16x32xf32>
    %19 = tpu.matmul %17, %18, %cst_7 {dimension_numbers = #tpu.dot_dimension_numbers<[1], [0], [0], [1], [0, 0, 1, 1], [], []>} : vector<16x64xbf16>, vector<64x32xbf16>, vector<16x32xf32> -> vector<16x32xf32>
    %20 = arith.addf %9, %19 : vector<16x32xf32>
    %c0_8 = arith.constant 0 : index
    %c0_9 = arith.constant 0 : index
    %21 = vector.load %arg5[%c0_8, %c0_9] : memref<1x32xf32, #tpu.memory_space<vmem>>, vector<1x32xf32>
    %22 = vector.broadcast %21 : vector<1x32xf32> to vector<16x32xf32>
    %23 = arith.addf %20, %22 : vector<16x32xf32>
    %c0_10 = arith.constant 0 : index
    %c0_11 = arith.constant 0 : index
    %24 = vector.load %arg6[%c0_10, %c0_11] : memref<1x32xf32, #tpu.memory_space<vmem>>, vector<1x32xf32>
    %c0_12 = arith.constant 0 : index
    %c0_13 = arith.constant 0 : index
    %25 = vector.load %arg7[%c0_12, %c0_13] : memref<1x32xf32, #tpu.memory_space<vmem>>, vector<1x32xf32>
    %cst_14 = arith.constant dense<0.000000e+00> : vector<16xf32>
    %26 = vector.multi_reduction <add>, %23, %cst_14 [1] : vector<16x32xf32> to vector<16xf32>
    %27 = vector.shape_cast %26 : vector<16xf32> to vector<16x1xf32>
    %cst_15 = arith.constant 3.200000e+01 : f32
    %28 = vector.broadcast %cst_15 : f32 to vector<16x1xf32>
    %29 = arith.divf %27, %28 : vector<16x1xf32>
    %30 = vector.broadcast %29 : vector<16x1xf32> to vector<16x32xf32>
    %31 = arith.subf %23, %30 : vector<16x32xf32>
    %32 = vector.broadcast %29 : vector<16x1xf32> to vector<16x32xf32>
    %33 = arith.subf %23, %32 : vector<16x32xf32>
    %34 = arith.mulf %31, %33 : vector<16x32xf32>
    %cst_16 = arith.constant dense<0.000000e+00> : vector<16xf32>
    %35 = vector.multi_reduction <add>, %34, %cst_16 [1] : vector<16x32xf32> to vector<16xf32>
    %36 = vector.shape_cast %35 : vector<16xf32> to vector<16x1xf32>
    %cst_17 = arith.constant 3.200000e+01 : f32
    %37 = vector.broadcast %cst_17 : f32 to vector<16x1xf32>
    %38 = arith.divf %36, %37 : vector<16x1xf32>
    %39 = vector.broadcast %29 : vector<16x1xf32> to vector<16x32xf32>
    %40 = arith.subf %23, %39 : vector<16x32xf32>
    %cst_18 = arith.constant 9.99999996E-13 : f32
    %41 = vector.broadcast %cst_18 : f32 to vector<16x1xf32>
    %42 = arith.addf %38, %41 : vector<16x1xf32>
    %43 = math.rsqrt %42 : vector<16x1xf32>
    %44 = vector.broadcast %43 : vector<16x1xf32> to vector<16x32xf32>
    %45 = arith.mulf %40, %44 : vector<16x32xf32>
    %46 = vector.broadcast %24 : vector<1x32xf32> to vector<16x32xf32>
    %47 = arith.mulf %45, %46 : vector<16x32xf32>
    %48 = vector.broadcast %25 : vector<1x32xf32> to vector<16x32xf32>
    %49 = arith.addf %47, %48 : vector<16x32xf32>
    %50 = tpu.iota {dimensions = array<i32: 1>} : vector<1x32xi32>
    %c0_i32 = arith.constant 0 : i32
    %51 = vector.broadcast %c0_i32 : i32 to vector<1x32xi32>
    %52 = arith.cmpi sge, %50, %51 : vector<1x32xi32>
    %c8_i32 = arith.constant 8 : i32
    %53 = vector.broadcast %c8_i32 : i32 to vector<1x32xi32>
    %54 = arith.cmpi slt, %50, %53 : vector<1x32xi32>
    %55 = arith.andi %52, %54 : vector<1x32xi1>
    %c8_i32_19 = arith.constant 8 : i32
    %56 = vector.broadcast %c8_i32_19 : i32 to vector<1x32xi32>
    %57 = arith.cmpi sge, %50, %56 : vector<1x32xi32>
    %c16_i32 = arith.constant 16 : i32
    %58 = vector.broadcast %c16_i32 : i32 to vector<1x32xi32>
    %59 = arith.cmpi slt, %50, %58 : vector<1x32xi32>
    %60 = arith.andi %57, %59 : vector<1x32xi1>
    %c16_i32_20 = arith.constant 16 : i32
    %61 = vector.broadcast %c16_i32_20 : i32 to vector<1x32xi32>
    %62 = arith.cmpi sge, %50, %61 : vector<1x32xi32>
    %c24_i32 = arith.constant 24 : i32
    %63 = vector.broadcast %c24_i32 : i32 to vector<1x32xi32>
    %64 = arith.cmpi slt, %50, %63 : vector<1x32xi32>
    %65 = arith.andi %62, %64 : vector<1x32xi1>
    %c24_i32_21 = arith.constant 24 : i32
    %66 = vector.broadcast %c24_i32_21 : i32 to vector<1x32xi32>
    %67 = arith.cmpi sge, %50, %66 : vector<1x32xi32>
    %c32_i32 = arith.constant 32 : i32
    %68 = vector.broadcast %c32_i32 : i32 to vector<1x32xi32>
    %69 = arith.cmpi slt, %50, %68 : vector<1x32xi32>
    %70 = arith.andi %67, %69 : vector<1x32xi1>
    %c0_22 = arith.constant 0 : index
    %c0_23 = arith.constant 0 : index
    %71 = vector.load %arg2[%c0_22, %c0_23] : memref<16x16xf32, #tpu.memory_space<vmem>>, vector<16x16xf32>
    %72 = tpu.concatenate %71, %71, %71, %71 in 0 : vector<16x16xf32>, vector<16x16xf32>, vector<16x16xf32>, vector<16x16xf32> -> vector<64x16xf32>
    %73 = arith.truncf %49 : vector<16x32xf32> to vector<16x32xbf16>
    %c0_24 = arith.constant 0 : index
    %c0_25 = arith.constant 0 : index
    %c0_26 = arith.constant 0 : index
    %74 = vector.load %arg8[%c0_24, %c0_25, %c0_26] : memref<2x32x96xbf16, #tpu.memory_space<vmem>>, vector<1x32x96xbf16>
    %75 = vector.shape_cast %74 : vector<1x32x96xbf16> to vector<32x96xbf16>
    %cst_27 = arith.constant dense<0.000000e+00> : vector<16x96xf32>
    %76 = tpu.matmul %73, %75, %cst_27 {dimension_numbers = #tpu.dot_dimension_numbers<[1], [0], [0], [1], [0, 0, 1, 1], [], []>} : vector<16x32xbf16>, vector<32x96xbf16>, vector<16x96xf32> -> vector<16x96xf32>
    %c0_28 = arith.constant 0 : index
    %c0_29 = arith.constant 0 : index
    %c0_30 = arith.constant 0 : index
    %77 = vector.load %arg9[%c0_28, %c0_29, %c0_30] : memref<2x1x96xf32, #tpu.memory_space<vmem>>, vector<1x1x96xf32>
    %78 = vector.shape_cast %77 : vector<1x1x96xf32> to vector<1x96xf32>
    %79 = vector.broadcast %78 : vector<1x96xf32> to vector<16x96xf32>
    %80 = arith.addf %76, %79 : vector<16x96xf32>
    %81 = vector.extract_strided_slice %80 {offsets = [0, 0], sizes = [16, 32], strides = [1, 1]} : vector<16x96xf32> to vector<16x32xf32>
    %82 = vector.extract_strided_slice %80 {offsets = [0, 32], sizes = [16, 32], strides = [1, 1]} : vector<16x96xf32> to vector<16x32xf32>
    %83 = arith.truncf %82 : vector<16x32xf32> to vector<16x32xbf16>
    %84 = vector.extract_strided_slice %80 {offsets = [0, 64], sizes = [16, 32], strides = [1, 1]} : vector<16x96xf32> to vector<16x32xf32>
    %85 = arith.truncf %84 : vector<16x32xf32> to vector<16x32xbf16>
    %cst_31 = arith.constant 0.000000e+00 : f32
    %86 = vector.shape_cast %55 : vector<1x32xi1> to vector<1x32xi1>
    %87 = vector.broadcast %86 : vector<1x32xi1> to vector<16x32xi1>
    %88 = vector.broadcast %cst_31 : f32 to vector<16x32xf32>
    %89 = arith.select %87, %81, %88 : vector<16x32xi1>, vector<16x32xf32>
    %cst_32 = arith.constant 0.000000e+00 : f32
    %90 = vector.shape_cast %60 : vector<1x32xi1> to vector<1x32xi1>
    %91 = vector.broadcast %90 : vector<1x32xi1> to vector<16x32xi1>
    %92 = vector.broadcast %cst_32 : f32 to vector<16x32xf32>
    %93 = arith.select %91, %81, %92 : vector<16x32xi1>, vector<16x32xf32>
    %cst_33 = arith.constant 0.000000e+00 : f32
    %94 = vector.shape_cast %65 : vector<1x32xi1> to vector<1x32xi1>
    %95 = vector.broadcast %94 : vector<1x32xi1> to vector<16x32xi1>
    %96 = vector.broadcast %cst_33 : f32 to vector<16x32xf32>
    %97 = arith.select %95, %81, %96 : vector<16x32xi1>, vector<16x32xf32>
    %cst_34 = arith.constant 0.000000e+00 : f32
    %98 = vector.shape_cast %70 : vector<1x32xi1> to vector<1x32xi1>
    %99 = vector.broadcast %98 : vector<1x32xi1> to vector<16x32xi1>
    %100 = vector.broadcast %cst_34 : f32 to vector<16x32xf32>
    %101 = arith.select %99, %81, %100 : vector<16x32xi1>, vector<16x32xf32>
    %102 = tpu.concatenate %89, %93, %97, %101 in 0 : vector<16x32xf32>, vector<16x32xf32>, vector<16x32xf32>, vector<16x32xf32> -> vector<64x32xf32>
    %103 = arith.truncf %102 : vector<64x32xf32> to vector<64x32xbf16>
    %cst_35 = arith.constant dense<0.000000e+00> : vector<64x16xf32>
    %104 = tpu.matmul %103, %83, %cst_35 {dimension_numbers = #tpu.dot_dimension_numbers<[1], [1], [0], [0], [0, 0, 1, 0], [], []>} : vector<64x32xbf16>, vector<16x32xbf16>, vector<64x16xf32> -> vector<64x16xf32>
    %cst_36 = arith.constant 0.353553385 : f32
    %105 = vector.broadcast %cst_36 : f32 to vector<64x16xf32>
    %106 = arith.mulf %104, %105 : vector<64x16xf32>
    %107 = arith.addf %106, %72 : vector<64x16xf32>
    %cst_37 = arith.constant dense<0xFF800000> : vector<64xf32>
    %108 = vector.multi_reduction <maximumf>, %107, %cst_37 [1] : vector<64x16xf32> to vector<64xf32>
    %109 = vector.shape_cast %108 : vector<64xf32> to vector<64x1xf32>
    %110 = vector.broadcast %109 : vector<64x1xf32> to vector<64x16xf32>
    %111 = arith.subf %107, %110 : vector<64x16xf32>
    %112 = math.exp %111 : vector<64x16xf32>
    %cst_38 = arith.constant dense<0.000000e+00> : vector<64xf32>
    %113 = vector.multi_reduction <add>, %112, %cst_38 [1] : vector<64x16xf32> to vector<64xf32>
    %114 = vector.shape_cast %113 : vector<64xf32> to vector<64x1xf32>
    %115 = tpu.reciprocal %114 {approx = true} : vector<64x1xf32> -> vector<64x1xf32>
    %116 = vector.broadcast %115 : vector<64x1xf32> to vector<64x16xf32>
    %117 = arith.mulf %112, %116 : vector<64x16xf32>
    %118 = arith.truncf %117 : vector<64x16xf32> to vector<64x16xbf16>
    %cst_39 = arith.constant dense<0.000000e+00> : vector<64x32xf32>
    %119 = tpu.matmul %118, %85, %cst_39 {dimension_numbers = #tpu.dot_dimension_numbers<[1], [0], [0], [1], [0, 0, 1, 1], [], []>} : vector<64x16xbf16>, vector<16x32xbf16>, vector<64x32xf32> -> vector<64x32xf32>
    %120 = vector.extract_strided_slice %119 {offsets = [0, 0], sizes = [16, 32], strides = [1, 1]} : vector<64x32xf32> to vector<16x32xf32>
    %cst_40 = arith.constant 0.000000e+00 : f32
    %121 = vector.shape_cast %55 : vector<1x32xi1> to vector<1x32xi1>
    %122 = vector.broadcast %121 : vector<1x32xi1> to vector<16x32xi1>
    %123 = vector.broadcast %cst_40 : f32 to vector<16x32xf32>
    %124 = arith.select %122, %120, %123 : vector<16x32xi1>, vector<16x32xf32>
    %125 = vector.extract_strided_slice %119 {offsets = [16, 0], sizes = [16, 32], strides = [1, 1]} : vector<64x32xf32> to vector<16x32xf32>
    %cst_41 = arith.constant 0.000000e+00 : f32
    %126 = vector.shape_cast %60 : vector<1x32xi1> to vector<1x32xi1>
    %127 = vector.broadcast %126 : vector<1x32xi1> to vector<16x32xi1>
    %128 = vector.broadcast %cst_41 : f32 to vector<16x32xf32>
    %129 = arith.select %127, %125, %128 : vector<16x32xi1>, vector<16x32xf32>
    %130 = arith.addf %124, %129 : vector<16x32xf32>
    %131 = vector.extract_strided_slice %119 {offsets = [32, 0], sizes = [16, 32], strides = [1, 1]} : vector<64x32xf32> to vector<16x32xf32>
    %cst_42 = arith.constant 0.000000e+00 : f32
    %132 = vector.shape_cast %65 : vector<1x32xi1> to vector<1x32xi1>
    %133 = vector.broadcast %132 : vector<1x32xi1> to vector<16x32xi1>
    %134 = vector.broadcast %cst_42 : f32 to vector<16x32xf32>
    %135 = arith.select %133, %131, %134 : vector<16x32xi1>, vector<16x32xf32>
    %136 = arith.addf %130, %135 : vector<16x32xf32>
    %137 = vector.extract_strided_slice %119 {offsets = [48, 0], sizes = [16, 32], strides = [1, 1]} : vector<64x32xf32> to vector<16x32xf32>
    %cst_43 = arith.constant 0.000000e+00 : f32
    %138 = vector.shape_cast %70 : vector<1x32xi1> to vector<1x32xi1>
    %139 = vector.broadcast %138 : vector<1x32xi1> to vector<16x32xi1>
    %140 = vector.broadcast %cst_43 : f32 to vector<16x32xf32>
    %141 = arith.select %139, %137, %140 : vector<16x32xi1>, vector<16x32xf32>
    %142 = arith.addf %136, %141 : vector<16x32xf32>
    %143 = arith.truncf %142 : vector<16x32xf32> to vector<16x32xbf16>
    %c0_44 = arith.constant 0 : index
    %c0_45 = arith.constant 0 : index
    %c0_46 = arith.constant 0 : index
    %144 = vector.load %arg10[%c0_44, %c0_45, %c0_46] : memref<2x32x32xbf16, #tpu.memory_space<vmem>>, vector<1x32x32xbf16>
    %145 = vector.shape_cast %144 : vector<1x32x32xbf16> to vector<32x32xbf16>
    %cst_47 = arith.constant dense<0.000000e+00> : vector<16x32xf32>
    %146 = tpu.matmul %143, %145, %cst_47 {dimension_numbers = #tpu.dot_dimension_numbers<[1], [0], [0], [1], [0, 0, 1, 1], [], []>} : vector<16x32xbf16>, vector<32x32xbf16>, vector<16x32xf32> -> vector<16x32xf32>
    %c0_48 = arith.constant 0 : index
    %c0_49 = arith.constant 0 : index
    %c0_50 = arith.constant 0 : index
    %147 = vector.load %arg11[%c0_48, %c0_49, %c0_50] : memref<2x1x32xf32, #tpu.memory_space<vmem>>, vector<1x1x32xf32>
    %148 = vector.shape_cast %147 : vector<1x1x32xf32> to vector<1x32xf32>
    %149 = vector.broadcast %148 : vector<1x32xf32> to vector<16x32xf32>
    %150 = arith.addf %146, %149 : vector<16x32xf32>
    %151 = arith.addf %150, %49 : vector<16x32xf32>
    %c0_51 = arith.constant 0 : index
    %c0_52 = arith.constant 0 : index
    %c0_53 = arith.constant 0 : index
    %152 = vector.load %arg12[%c0_51, %c0_52, %c0_53] : memref<2x1x32xf32, #tpu.memory_space<vmem>>, vector<1x1x32xf32>
    %153 = vector.shape_cast %152 : vector<1x1x32xf32> to vector<1x32xf32>
    %c0_54 = arith.constant 0 : index
    %c0_55 = arith.constant 0 : index
    %c0_56 = arith.constant 0 : index
    %154 = vector.load %arg13[%c0_54, %c0_55, %c0_56] : memref<2x1x32xf32, #tpu.memory_space<vmem>>, vector<1x1x32xf32>
    %155 = vector.shape_cast %154 : vector<1x1x32xf32> to vector<1x32xf32>
    %cst_57 = arith.constant dense<0.000000e+00> : vector<16xf32>
    %156 = vector.multi_reduction <add>, %151, %cst_57 [1] : vector<16x32xf32> to vector<16xf32>
    %157 = vector.shape_cast %156 : vector<16xf32> to vector<16x1xf32>
    %cst_58 = arith.constant 3.200000e+01 : f32
    %158 = vector.broadcast %cst_58 : f32 to vector<16x1xf32>
    %159 = arith.divf %157, %158 : vector<16x1xf32>
    %160 = vector.broadcast %159 : vector<16x1xf32> to vector<16x32xf32>
    %161 = arith.subf %151, %160 : vector<16x32xf32>
    %162 = vector.broadcast %159 : vector<16x1xf32> to vector<16x32xf32>
    %163 = arith.subf %151, %162 : vector<16x32xf32>
    %164 = arith.mulf %161, %163 : vector<16x32xf32>
    %cst_59 = arith.constant dense<0.000000e+00> : vector<16xf32>
    %165 = vector.multi_reduction <add>, %164, %cst_59 [1] : vector<16x32xf32> to vector<16xf32>
    %166 = vector.shape_cast %165 : vector<16xf32> to vector<16x1xf32>
    %cst_60 = arith.constant 3.200000e+01 : f32
    %167 = vector.broadcast %cst_60 : f32 to vector<16x1xf32>
    %168 = arith.divf %166, %167 : vector<16x1xf32>
    %169 = vector.broadcast %159 : vector<16x1xf32> to vector<16x32xf32>
    %170 = arith.subf %151, %169 : vector<16x32xf32>
    %cst_61 = arith.constant 9.99999996E-13 : f32
    %171 = vector.broadcast %cst_61 : f32 to vector<16x1xf32>
    %172 = arith.addf %168, %171 : vector<16x1xf32>
    %173 = math.rsqrt %172 : vector<16x1xf32>
    %174 = vector.broadcast %173 : vector<16x1xf32> to vector<16x32xf32>
    %175 = arith.mulf %170, %174 : vector<16x32xf32>
    %176 = vector.broadcast %153 : vector<1x32xf32> to vector<16x32xf32>
    %177 = arith.mulf %175, %176 : vector<16x32xf32>
    %178 = vector.broadcast %155 : vector<1x32xf32> to vector<16x32xf32>
    %179 = arith.addf %177, %178 : vector<16x32xf32>
    %180 = arith.truncf %179 : vector<16x32xf32> to vector<16x32xbf16>
    %c0_62 = arith.constant 0 : index
    %c0_63 = arith.constant 0 : index
    %c0_64 = arith.constant 0 : index
    %181 = vector.load %arg14[%c0_62, %c0_63, %c0_64] : memref<2x32x64xbf16, #tpu.memory_space<vmem>>, vector<1x32x64xbf16>
    %182 = vector.shape_cast %181 : vector<1x32x64xbf16> to vector<32x64xbf16>
    %cst_65 = arith.constant dense<0.000000e+00> : vector<16x64xf32>
    %183 = tpu.matmul %180, %182, %cst_65 {dimension_numbers = #tpu.dot_dimension_numbers<[1], [0], [0], [1], [0, 0, 1, 1], [], []>} : vector<16x32xbf16>, vector<32x64xbf16>, vector<16x64xf32> -> vector<16x64xf32>
    %c0_66 = arith.constant 0 : index
    %c0_67 = arith.constant 0 : index
    %c0_68 = arith.constant 0 : index
    %184 = vector.load %arg15[%c0_66, %c0_67, %c0_68] : memref<2x1x64xf32, #tpu.memory_space<vmem>>, vector<1x1x64xf32>
    %185 = vector.shape_cast %184 : vector<1x1x64xf32> to vector<1x64xf32>
    %186 = vector.broadcast %185 : vector<1x64xf32> to vector<16x64xf32>
    %187 = arith.addf %183, %186 : vector<16x64xf32>
    %cst_69 = arith.constant 5.000000e-01 : f32
    %188 = vector.broadcast %cst_69 : f32 to vector<16x64xf32>
    %189 = arith.mulf %188, %187 : vector<16x64xf32>
    %cst_70 = arith.constant 4.471500e-02 : f32
    %190 = vector.broadcast %cst_70 : f32 to vector<16x64xf32>
    %191 = arith.mulf %190, %187 : vector<16x64xf32>
    %192 = arith.mulf %191, %187 : vector<16x64xf32>
    %193 = arith.mulf %192, %187 : vector<16x64xf32>
    %194 = arith.addf %187, %193 : vector<16x64xf32>
    %cst_71 = arith.constant 0.797884583 : f32
    %195 = vector.broadcast %cst_71 : f32 to vector<16x64xf32>
    %196 = arith.mulf %195, %194 : vector<16x64xf32>
    %197 = math.tanh %196 : vector<16x64xf32>
    %cst_72 = arith.constant 1.000000e+00 : f32
    %198 = vector.broadcast %cst_72 : f32 to vector<16x64xf32>
    %199 = arith.addf %198, %197 : vector<16x64xf32>
    %200 = arith.mulf %189, %199 : vector<16x64xf32>
    %201 = arith.truncf %200 : vector<16x64xf32> to vector<16x64xbf16>
    %c0_73 = arith.constant 0 : index
    %c0_74 = arith.constant 0 : index
    %c0_75 = arith.constant 0 : index
    %202 = vector.load %arg16[%c0_73, %c0_74, %c0_75] : memref<2x64x32xbf16, #tpu.memory_space<vmem>>, vector<1x64x32xbf16>
    %203 = vector.shape_cast %202 : vector<1x64x32xbf16> to vector<64x32xbf16>
    %cst_76 = arith.constant dense<0.000000e+00> : vector<16x32xf32>
    %204 = tpu.matmul %201, %203, %cst_76 {dimension_numbers = #tpu.dot_dimension_numbers<[1], [0], [0], [1], [0, 0, 1, 1], [], []>} : vector<16x64xbf16>, vector<64x32xbf16>, vector<16x32xf32> -> vector<16x32xf32>
    %c0_77 = arith.constant 0 : index
    %c0_78 = arith.constant 0 : index
    %c0_79 = arith.constant 0 : index
    %205 = vector.load %arg17[%c0_77, %c0_78, %c0_79] : memref<2x1x32xf32, #tpu.memory_space<vmem>>, vector<1x1x32xf32>
    %206 = vector.shape_cast %205 : vector<1x1x32xf32> to vector<1x32xf32>
    %207 = vector.broadcast %206 : vector<1x32xf32> to vector<16x32xf32>
    %208 = arith.addf %204, %207 : vector<16x32xf32>
    %209 = arith.addf %208, %179 : vector<16x32xf32>
    %c0_80 = arith.constant 0 : index
    %c0_81 = arith.constant 0 : index
    %c0_82 = arith.constant 0 : index
    %210 = vector.load %arg18[%c0_80, %c0_81, %c0_82] : memref<2x1x32xf32, #tpu.memory_space<vmem>>, vector<1x1x32xf32>
    %211 = vector.shape_cast %210 : vector<1x1x32xf32> to vector<1x32xf32>
    %c0_83 = arith.constant 0 : index
    %c0_84 = arith.constant 0 : index
    %c0_85 = arith.constant 0 : index
    %212 = vector.load %arg19[%c0_83, %c0_84, %c0_85] : memref<2x1x32xf32, #tpu.memory_space<vmem>>, vector<1x1x32xf32>
    %213 = vector.shape_cast %212 : vector<1x1x32xf32> to vector<1x32xf32>
    %cst_86 = arith.constant dense<0.000000e+00> : vector<16xf32>
    %214 = vector.multi_reduction <add>, %209, %cst_86 [1] : vector<16x32xf32> to vector<16xf32>
    %215 = vector.shape_cast %214 : vector<16xf32> to vector<16x1xf32>
    %cst_87 = arith.constant 3.200000e+01 : f32
    %216 = vector.broadcast %cst_87 : f32 to vector<16x1xf32>
    %217 = arith.divf %215, %216 : vector<16x1xf32>
    %218 = vector.broadcast %217 : vector<16x1xf32> to vector<16x32xf32>
    %219 = arith.subf %209, %218 : vector<16x32xf32>
    %220 = vector.broadcast %217 : vector<16x1xf32> to vector<16x32xf32>
    %221 = arith.subf %209, %220 : vector<16x32xf32>
    %222 = arith.mulf %219, %221 : vector<16x32xf32>
    %cst_88 = arith.constant dense<0.000000e+00> : vector<16xf32>
    %223 = vector.multi_reduction <add>, %222, %cst_88 [1] : vector<16x32xf32> to vector<16xf32>
    %224 = vector.shape_cast %223 : vector<16xf32> to vector<16x1xf32>
    %cst_89 = arith.constant 3.200000e+01 : f32
    %225 = vector.broadcast %cst_89 : f32 to vector<16x1xf32>
    %226 = arith.divf %224, %225 : vector<16x1xf32>
    %227 = vector.broadcast %217 : vector<16x1xf32> to vector<16x32xf32>
    %228 = arith.subf %209, %227 : vector<16x32xf32>
    %cst_90 = arith.constant 9.99999996E-13 : f32
    %229 = vector.broadcast %cst_90 : f32 to vector<16x1xf32>
    %230 = arith.addf %226, %229 : vector<16x1xf32>
    %231 = math.rsqrt %230 : vector<16x1xf32>
    %232 = vector.broadcast %231 : vector<16x1xf32> to vector<16x32xf32>
    %233 = arith.mulf %228, %232 : vector<16x32xf32>
    %234 = vector.broadcast %211 : vector<1x32xf32> to vector<16x32xf32>
    %235 = arith.mulf %233, %234 : vector<16x32xf32>
    %236 = vector.broadcast %213 : vector<1x32xf32> to vector<16x32xf32>
    %237 = arith.addf %235, %236 : vector<16x32xf32>
    %238 = arith.truncf %237 : vector<16x32xf32> to vector<16x32xbf16>
    %c1 = arith.constant 1 : index
    %c0_91 = arith.constant 0 : index
    %c0_92 = arith.constant 0 : index
    %239 = vector.load %arg8[%c1, %c0_91, %c0_92] : memref<2x32x96xbf16, #tpu.memory_space<vmem>>, vector<1x32x96xbf16>
    %240 = vector.shape_cast %239 : vector<1x32x96xbf16> to vector<32x96xbf16>
    %cst_93 = arith.constant dense<0.000000e+00> : vector<16x96xf32>
    %241 = tpu.matmul %238, %240, %cst_93 {dimension_numbers = #tpu.dot_dimension_numbers<[1], [0], [0], [1], [0, 0, 1, 1], [], []>} : vector<16x32xbf16>, vector<32x96xbf16>, vector<16x96xf32> -> vector<16x96xf32>
    %c1_94 = arith.constant 1 : index
    %c0_95 = arith.constant 0 : index
    %c0_96 = arith.constant 0 : index
    %242 = vector.load %arg9[%c1_94, %c0_95, %c0_96] : memref<2x1x96xf32, #tpu.memory_space<vmem>>, vector<1x1x96xf32>
    %243 = vector.shape_cast %242 : vector<1x1x96xf32> to vector<1x96xf32>
    %244 = vector.broadcast %243 : vector<1x96xf32> to vector<16x96xf32>
    %245 = arith.addf %241, %244 : vector<16x96xf32>
    %246 = vector.extract_strided_slice %245 {offsets = [0, 0], sizes = [16, 32], strides = [1, 1]} : vector<16x96xf32> to vector<16x32xf32>
    %247 = vector.extract_strided_slice %245 {offsets = [0, 32], sizes = [16, 32], strides = [1, 1]} : vector<16x96xf32> to vector<16x32xf32>
    %248 = arith.truncf %247 : vector<16x32xf32> to vector<16x32xbf16>
    %249 = vector.extract_strided_slice %245 {offsets = [0, 64], sizes = [16, 32], strides = [1, 1]} : vector<16x96xf32> to vector<16x32xf32>
    %250 = arith.truncf %249 : vector<16x32xf32> to vector<16x32xbf16>
    %cst_97 = arith.constant 0.000000e+00 : f32
    %251 = vector.shape_cast %55 : vector<1x32xi1> to vector<1x32xi1>
    %252 = vector.broadcast %251 : vector<1x32xi1> to vector<16x32xi1>
    %253 = vector.broadcast %cst_97 : f32 to vector<16x32xf32>
    %254 = arith.select %252, %246, %253 : vector<16x32xi1>, vector<16x32xf32>
    %cst_98 = arith.constant 0.000000e+00 : f32
    %255 = vector.shape_cast %60 : vector<1x32xi1> to vector<1x32xi1>
    %256 = vector.broadcast %255 : vector<1x32xi1> to vector<16x32xi1>
    %257 = vector.broadcast %cst_98 : f32 to vector<16x32xf32>
    %258 = arith.select %256, %246, %257 : vector<16x32xi1>, vector<16x32xf32>
    %cst_99 = arith.constant 0.000000e+00 : f32
    %259 = vector.shape_cast %65 : vector<1x32xi1> to vector<1x32xi1>
    %260 = vector.broadcast %259 : vector<1x32xi1> to vector<16x32xi1>
    %261 = vector.broadcast %cst_99 : f32 to vector<16x32xf32>
    %262 = arith.select %260, %246, %261 : vector<16x32xi1>, vector<16x32xf32>
    %cst_100 = arith.constant 0.000000e+00 : f32
    %263 = vector.shape_cast %70 : vector<1x32xi1> to vector<1x32xi1>
    %264 = vector.broadcast %263 : vector<1x32xi1> to vector<16x32xi1>
    %265 = vector.broadcast %cst_100 : f32 to vector<16x32xf32>
    %266 = arith.select %264, %246, %265 : vector<16x32xi1>, vector<16x32xf32>
    %267 = tpu.concatenate %254, %258, %262, %266 in 0 : vector<16x32xf32>, vector<16x32xf32>, vector<16x32xf32>, vector<16x32xf32> -> vector<64x32xf32>
    %268 = arith.truncf %267 : vector<64x32xf32> to vector<64x32xbf16>
    %cst_101 = arith.constant dense<0.000000e+00> : vector<64x16xf32>
    %269 = tpu.matmul %268, %248, %cst_101 {dimension_numbers = #tpu.dot_dimension_numbers<[1], [1], [0], [0], [0, 0, 1, 0], [], []>} : vector<64x32xbf16>, vector<16x32xbf16>, vector<64x16xf32> -> vector<64x16xf32>
    %cst_102 = arith.constant 0.353553385 : f32
    %270 = vector.broadcast %cst_102 : f32 to vector<64x16xf32>
    %271 = arith.mulf %269, %270 : vector<64x16xf32>
    %272 = arith.addf %271, %72 : vector<64x16xf32>
    %cst_103 = arith.constant dense<0xFF800000> : vector<64xf32>
    %273 = vector.multi_reduction <maximumf>, %272, %cst_103 [1] : vector<64x16xf32> to vector<64xf32>
    %274 = vector.shape_cast %273 : vector<64xf32> to vector<64x1xf32>
    %275 = vector.broadcast %274 : vector<64x1xf32> to vector<64x16xf32>
    %276 = arith.subf %272, %275 : vector<64x16xf32>
    %277 = math.exp %276 : vector<64x16xf32>
    %cst_104 = arith.constant dense<0.000000e+00> : vector<64xf32>
    %278 = vector.multi_reduction <add>, %277, %cst_104 [1] : vector<64x16xf32> to vector<64xf32>
    %279 = vector.shape_cast %278 : vector<64xf32> to vector<64x1xf32>
    %280 = tpu.reciprocal %279 {approx = true} : vector<64x1xf32> -> vector<64x1xf32>
    %281 = vector.broadcast %280 : vector<64x1xf32> to vector<64x16xf32>
    %282 = arith.mulf %277, %281 : vector<64x16xf32>
    %283 = arith.truncf %282 : vector<64x16xf32> to vector<64x16xbf16>
    %cst_105 = arith.constant dense<0.000000e+00> : vector<64x32xf32>
    %284 = tpu.matmul %283, %250, %cst_105 {dimension_numbers = #tpu.dot_dimension_numbers<[1], [0], [0], [1], [0, 0, 1, 1], [], []>} : vector<64x16xbf16>, vector<16x32xbf16>, vector<64x32xf32> -> vector<64x32xf32>
    %285 = vector.extract_strided_slice %284 {offsets = [0, 0], sizes = [16, 32], strides = [1, 1]} : vector<64x32xf32> to vector<16x32xf32>
    %cst_106 = arith.constant 0.000000e+00 : f32
    %286 = vector.shape_cast %55 : vector<1x32xi1> to vector<1x32xi1>
    %287 = vector.broadcast %286 : vector<1x32xi1> to vector<16x32xi1>
    %288 = vector.broadcast %cst_106 : f32 to vector<16x32xf32>
    %289 = arith.select %287, %285, %288 : vector<16x32xi1>, vector<16x32xf32>
    %290 = vector.extract_strided_slice %284 {offsets = [16, 0], sizes = [16, 32], strides = [1, 1]} : vector<64x32xf32> to vector<16x32xf32>
    %cst_107 = arith.constant 0.000000e+00 : f32
    %291 = vector.shape_cast %60 : vector<1x32xi1> to vector<1x32xi1>
    %292 = vector.broadcast %291 : vector<1x32xi1> to vector<16x32xi1>
    %293 = vector.broadcast %cst_107 : f32 to vector<16x32xf32>
    %294 = arith.select %292, %290, %293 : vector<16x32xi1>, vector<16x32xf32>
    %295 = arith.addf %289, %294 : vector<16x32xf32>
    %296 = vector.extract_strided_slice %284 {offsets = [32, 0], sizes = [16, 32], strides = [1, 1]} : vector<64x32xf32> to vector<16x32xf32>
    %cst_108 = arith.constant 0.000000e+00 : f32
    %297 = vector.shape_cast %65 : vector<1x32xi1> to vector<1x32xi1>
    %298 = vector.broadcast %297 : vector<1x32xi1> to vector<16x32xi1>
    %299 = vector.broadcast %cst_108 : f32 to vector<16x32xf32>
    %300 = arith.select %298, %296, %299 : vector<16x32xi1>, vector<16x32xf32>
    %301 = arith.addf %295, %300 : vector<16x32xf32>
    %302 = vector.extract_strided_slice %284 {offsets = [48, 0], sizes = [16, 32], strides = [1, 1]} : vector<64x32xf32> to vector<16x32xf32>
    %cst_109 = arith.constant 0.000000e+00 : f32
    %303 = vector.shape_cast %70 : vector<1x32xi1> to vector<1x32xi1>
    %304 = vector.broadcast %303 : vector<1x32xi1> to vector<16x32xi1>
    %305 = vector.broadcast %cst_109 : f32 to vector<16x32xf32>
    %306 = arith.select %304, %302, %305 : vector<16x32xi1>, vector<16x32xf32>
    %307 = arith.addf %301, %306 : vector<16x32xf32>
    %308 = arith.truncf %307 : vector<16x32xf32> to vector<16x32xbf16>
    %c1_110 = arith.constant 1 : index
    %c0_111 = arith.constant 0 : index
    %c0_112 = arith.constant 0 : index
    %309 = vector.load %arg10[%c1_110, %c0_111, %c0_112] : memref<2x32x32xbf16, #tpu.memory_space<vmem>>, vector<1x32x32xbf16>
    %310 = vector.shape_cast %309 : vector<1x32x32xbf16> to vector<32x32xbf16>
    %cst_113 = arith.constant dense<0.000000e+00> : vector<16x32xf32>
    %311 = tpu.matmul %308, %310, %cst_113 {dimension_numbers = #tpu.dot_dimension_numbers<[1], [0], [0], [1], [0, 0, 1, 1], [], []>} : vector<16x32xbf16>, vector<32x32xbf16>, vector<16x32xf32> -> vector<16x32xf32>
    %c1_114 = arith.constant 1 : index
    %c0_115 = arith.constant 0 : index
    %c0_116 = arith.constant 0 : index
    %312 = vector.load %arg11[%c1_114, %c0_115, %c0_116] : memref<2x1x32xf32, #tpu.memory_space<vmem>>, vector<1x1x32xf32>
    %313 = vector.shape_cast %312 : vector<1x1x32xf32> to vector<1x32xf32>
    %314 = vector.broadcast %313 : vector<1x32xf32> to vector<16x32xf32>
    %315 = arith.addf %311, %314 : vector<16x32xf32>
    %316 = arith.addf %315, %237 : vector<16x32xf32>
    %c1_117 = arith.constant 1 : index
    %c0_118 = arith.constant 0 : index
    %c0_119 = arith.constant 0 : index
    %317 = vector.load %arg12[%c1_117, %c0_118, %c0_119] : memref<2x1x32xf32, #tpu.memory_space<vmem>>, vector<1x1x32xf32>
    %318 = vector.shape_cast %317 : vector<1x1x32xf32> to vector<1x32xf32>
    %c1_120 = arith.constant 1 : index
    %c0_121 = arith.constant 0 : index
    %c0_122 = arith.constant 0 : index
    %319 = vector.load %arg13[%c1_120, %c0_121, %c0_122] : memref<2x1x32xf32, #tpu.memory_space<vmem>>, vector<1x1x32xf32>
    %320 = vector.shape_cast %319 : vector<1x1x32xf32> to vector<1x32xf32>
    %cst_123 = arith.constant dense<0.000000e+00> : vector<16xf32>
    %321 = vector.multi_reduction <add>, %316, %cst_123 [1] : vector<16x32xf32> to vector<16xf32>
    %322 = vector.shape_cast %321 : vector<16xf32> to vector<16x1xf32>
    %cst_124 = arith.constant 3.200000e+01 : f32
    %323 = vector.broadcast %cst_124 : f32 to vector<16x1xf32>
    %324 = arith.divf %322, %323 : vector<16x1xf32>
    %325 = vector.broadcast %324 : vector<16x1xf32> to vector<16x32xf32>
    %326 = arith.subf %316, %325 : vector<16x32xf32>
    %327 = vector.broadcast %324 : vector<16x1xf32> to vector<16x32xf32>
    %328 = arith.subf %316, %327 : vector<16x32xf32>
    %329 = arith.mulf %326, %328 : vector<16x32xf32>
    %cst_125 = arith.constant dense<0.000000e+00> : vector<16xf32>
    %330 = vector.multi_reduction <add>, %329, %cst_125 [1] : vector<16x32xf32> to vector<16xf32>
    %331 = vector.shape_cast %330 : vector<16xf32> to vector<16x1xf32>
    %cst_126 = arith.constant 3.200000e+01 : f32
    %332 = vector.broadcast %cst_126 : f32 to vector<16x1xf32>
    %333 = arith.divf %331, %332 : vector<16x1xf32>
    %334 = vector.broadcast %324 : vector<16x1xf32> to vector<16x32xf32>
    %335 = arith.subf %316, %334 : vector<16x32xf32>
    %cst_127 = arith.constant 9.99999996E-13 : f32
    %336 = vector.broadcast %cst_127 : f32 to vector<16x1xf32>
    %337 = arith.addf %333, %336 : vector<16x1xf32>
    %338 = math.rsqrt %337 : vector<16x1xf32>
    %339 = vector.broadcast %338 : vector<16x1xf32> to vector<16x32xf32>
    %340 = arith.mulf %335, %339 : vector<16x32xf32>
    %341 = vector.broadcast %318 : vector<1x32xf32> to vector<16x32xf32>
    %342 = arith.mulf %340, %341 : vector<16x32xf32>
    %343 = vector.broadcast %320 : vector<1x32xf32> to vector<16x32xf32>
    %344 = arith.addf %342, %343 : vector<16x32xf32>
    %345 = arith.truncf %344 : vector<16x32xf32> to vector<16x32xbf16>
    %c1_128 = arith.constant 1 : index
    %c0_129 = arith.constant 0 : index
    %c0_130 = arith.constant 0 : index
    %346 = vector.load %arg14[%c1_128, %c0_129, %c0_130] : memref<2x32x64xbf16, #tpu.memory_space<vmem>>, vector<1x32x64xbf16>
    %347 = vector.shape_cast %346 : vector<1x32x64xbf16> to vector<32x64xbf16>
    %cst_131 = arith.constant dense<0.000000e+00> : vector<16x64xf32>
    %348 = tpu.matmul %345, %347, %cst_131 {dimension_numbers = #tpu.dot_dimension_numbers<[1], [0], [0], [1], [0, 0, 1, 1], [], []>} : vector<16x32xbf16>, vector<32x64xbf16>, vector<16x64xf32> -> vector<16x64xf32>
    %c1_132 = arith.constant 1 : index
    %c0_133 = arith.constant 0 : index
    %c0_134 = arith.constant 0 : index
    %349 = vector.load %arg15[%c1_132, %c0_133, %c0_134] : memref<2x1x64xf32, #tpu.memory_space<vmem>>, vector<1x1x64xf32>
    %350 = vector.shape_cast %349 : vector<1x1x64xf32> to vector<1x64xf32>
    %351 = vector.broadcast %350 : vector<1x64xf32> to vector<16x64xf32>
    %352 = arith.addf %348, %351 : vector<16x64xf32>
    %cst_135 = arith.constant 5.000000e-01 : f32
    %353 = vector.broadcast %cst_135 : f32 to vector<16x64xf32>
    %354 = arith.mulf %353, %352 : vector<16x64xf32>
    %cst_136 = arith.constant 4.471500e-02 : f32
    %355 = vector.broadcast %cst_136 : f32 to vector<16x64xf32>
    %356 = arith.mulf %355, %352 : vector<16x64xf32>
    %357 = arith.mulf %356, %352 : vector<16x64xf32>
    %358 = arith.mulf %357, %352 : vector<16x64xf32>
    %359 = arith.addf %352, %358 : vector<16x64xf32>
    %cst_137 = arith.constant 0.797884583 : f32
    %360 = vector.broadcast %cst_137 : f32 to vector<16x64xf32>
    %361 = arith.mulf %360, %359 : vector<16x64xf32>
    %362 = math.tanh %361 : vector<16x64xf32>
    %cst_138 = arith.constant 1.000000e+00 : f32
    %363 = vector.broadcast %cst_138 : f32 to vector<16x64xf32>
    %364 = arith.addf %363, %362 : vector<16x64xf32>
    %365 = arith.mulf %354, %364 : vector<16x64xf32>
    %366 = arith.truncf %365 : vector<16x64xf32> to vector<16x64xbf16>
    %c1_139 = arith.constant 1 : index
    %c0_140 = arith.constant 0 : index
    %c0_141 = arith.constant 0 : index
    %367 = vector.load %arg16[%c1_139, %c0_140, %c0_141] : memref<2x64x32xbf16, #tpu.memory_space<vmem>>, vector<1x64x32xbf16>
    %368 = vector.shape_cast %367 : vector<1x64x32xbf16> to vector<64x32xbf16>
    %cst_142 = arith.constant dense<0.000000e+00> : vector<16x32xf32>
    %369 = tpu.matmul %366, %368, %cst_142 {dimension_numbers = #tpu.dot_dimension_numbers<[1], [0], [0], [1], [0, 0, 1, 1], [], []>} : vector<16x64xbf16>, vector<64x32xbf16>, vector<16x32xf32> -> vector<16x32xf32>
    %c1_143 = arith.constant 1 : index
    %c0_144 = arith.constant 0 : index
    %c0_145 = arith.constant 0 : index
    %370 = vector.load %arg17[%c1_143, %c0_144, %c0_145] : memref<2x1x32xf32, #tpu.memory_space<vmem>>, vector<1x1x32xf32>
    %371 = vector.shape_cast %370 : vector<1x1x32xf32> to vector<1x32xf32>
    %372 = vector.broadcast %371 : vector<1x32xf32> to vector<16x32xf32>
    %373 = arith.addf %369, %372 : vector<16x32xf32>
    %374 = arith.addf %373, %344 : vector<16x32xf32>
    %c1_146 = arith.constant 1 : index
    %c0_147 = arith.constant 0 : index
    %c0_148 = arith.constant 0 : index
    %375 = vector.load %arg18[%c1_146, %c0_147, %c0_148] : memref<2x1x32xf32, #tpu.memory_space<vmem>>, vector<1x1x32xf32>
    %376 = vector.shape_cast %375 : vector<1x1x32xf32> to vector<1x32xf32>
    %c1_149 = arith.constant 1 : index
    %c0_150 = arith.constant 0 : index
    %c0_151 = arith.constant 0 : index
    %377 = vector.load %arg19[%c1_149, %c0_150, %c0_151] : memref<2x1x32xf32, #tpu.memory_space<vmem>>, vector<1x1x32xf32>
    %378 = vector.shape_cast %377 : vector<1x1x32xf32> to vector<1x32xf32>
    %cst_152 = arith.constant dense<0.000000e+00> : vector<16xf32>
    %379 = vector.multi_reduction <add>, %374, %cst_152 [1] : vector<16x32xf32> to vector<16xf32>
    %380 = vector.shape_cast %379 : vector<16xf32> to vector<16x1xf32>
    %cst_153 = arith.constant 3.200000e+01 : f32
    %381 = vector.broadcast %cst_153 : f32 to vector<16x1xf32>
    %382 = arith.divf %380, %381 : vector<16x1xf32>
    %383 = vector.broadcast %382 : vector<16x1xf32> to vector<16x32xf32>
    %384 = arith.subf %374, %383 : vector<16x32xf32>
    %385 = vector.broadcast %382 : vector<16x1xf32> to vector<16x32xf32>
    %386 = arith.subf %374, %385 : vector<16x32xf32>
    %387 = arith.mulf %384, %386 : vector<16x32xf32>
    %cst_154 = arith.constant dense<0.000000e+00> : vector<16xf32>
    %388 = vector.multi_reduction <add>, %387, %cst_154 [1] : vector<16x32xf32> to vector<16xf32>
    %389 = vector.shape_cast %388 : vector<16xf32> to vector<16x1xf32>
    %cst_155 = arith.constant 3.200000e+01 : f32
    %390 = vector.broadcast %cst_155 : f32 to vector<16x1xf32>
    %391 = arith.divf %389, %390 : vector<16x1xf32>
    %392 = vector.broadcast %382 : vector<16x1xf32> to vector<16x32xf32>
    %393 = arith.subf %374, %392 : vector<16x32xf32>
    %cst_156 = arith.constant 9.99999996E-13 : f32
    %394 = vector.broadcast %cst_156 : f32 to vector<16x1xf32>
    %395 = arith.addf %391, %394 : vector<16x1xf32>
    %396 = math.rsqrt %395 : vector<16x1xf32>
    %397 = vector.broadcast %396 : vector<16x1xf32> to vector<16x32xf32>
    %398 = arith.mulf %393, %397 : vector<16x32xf32>
    %399 = vector.broadcast %376 : vector<1x32xf32> to vector<16x32xf32>
    %400 = arith.mulf %398, %399 : vector<16x32xf32>
    %401 = vector.broadcast %378 : vector<1x32xf32> to vector<16x32xf32>
    %402 = arith.addf %400, %401 : vector<16x32xf32>
    %403 = tpu.iota {dimensions = array<i32: 0>} : vector<8x1xi32>
    %404 = tpu.iota {dimensions = array<i32: 1>} : vector<1x16xi32>
    %c8_i32_157 = arith.constant 8 : i32
    %405 = vector.broadcast %c8_i32_157 : i32 to vector<8x1xi32>
    %406 = arith.muli %403, %405 : vector<8x1xi32>
    %407 = vector.broadcast %404 : vector<1x16xi32> to vector<8x16xi32>
    %408 = vector.broadcast %406 : vector<8x1xi32> to vector<8x16xi32>
    %409 = arith.cmpi eq, %407, %408 : vector<8x16xi32>
    %c2_i32 = arith.constant 2 : i32
    %410 = vector.broadcast %c2_i32 : i32 to vector<8x1xi32>
    %411 = arith.cmpi slt, %403, %410 : vector<8x1xi32>
    %412 = vector.broadcast %411 : vector<8x1xi1> to vector<8x16xi1>
    %413 = arith.andi %409, %412 : vector<8x16xi1>
    %414 = arith.extui %413 : vector<8x16xi1> to vector<8x16xi32>
    %415 = arith.sitofp %414 : vector<8x16xi32> to vector<8x16xf32>
    %416 = arith.truncf %415 : vector<8x16xf32> to vector<8x16xbf16>
    %417 = arith.truncf %402 : vector<16x32xf32> to vector<16x32xbf16>
    %cst_158 = arith.constant dense<0.000000e+00> : vector<8x32xf32>
    %418 = tpu.matmul %416, %417, %cst_158 {dimension_numbers = #tpu.dot_dimension_numbers<[1], [0], [0], [1], [0, 0, 1, 1], [], []>} : vector<8x16xbf16>, vector<16x32xbf16>, vector<8x32xf32> -> vector<8x32xf32>
    %419 = arith.truncf %418 : vector<8x32xf32> to vector<8x32xbf16>
    %c0_159 = arith.constant 0 : index
    %c0_160 = arith.constant 0 : index
    %420 = vector.load %arg20[%c0_159, %c0_160] : memref<32x32xbf16, #tpu.memory_space<vmem>>, vector<32x32xbf16>
    %cst_161 = arith.constant dense<0.000000e+00> : vector<8x32xf32>
    %421 = tpu.matmul %419, %420, %cst_161 {dimension_numbers = #tpu.dot_dimension_numbers<[1], [0], [0], [1], [0, 0, 1, 1], [], []>} : vector<8x32xbf16>, vector<32x32xbf16>, vector<8x32xf32> -> vector<8x32xf32>
    %c0_162 = arith.constant 0 : index
    %c0_163 = arith.constant 0 : index
    %422 = vector.load %arg21[%c0_162, %c0_163] : memref<1x32xf32, #tpu.memory_space<vmem>>, vector<1x32xf32>
    %423 = vector.broadcast %422 : vector<1x32xf32> to vector<8x32xf32>
    %424 = arith.addf %421, %423 : vector<8x32xf32>
    %425 = math.tanh %424 : vector<8x32xf32>
    %426 = arith.truncf %425 : vector<8x32xf32> to vector<8x32xbf16>
    %c0_164 = arith.constant 0 : index
    %c0_165 = arith.constant 0 : index
    %427 = vector.load %arg22[%c0_164, %c0_165] : memref<32x128xbf16, #tpu.memory_space<vmem>>, vector<32x128xbf16>
    %cst_166 = arith.constant dense<0.000000e+00> : vector<8x128xf32>
    %428 = tpu.matmul %426, %427, %cst_166 {dimension_numbers = #tpu.dot_dimension_numbers<[1], [0], [0], [1], [0, 0, 1, 1], [], []>} : vector<8x32xbf16>, vector<32x128xbf16>, vector<8x128xf32> -> vector<8x128xf32>
    %c0_167 = arith.constant 0 : index
    %c0_168 = arith.constant 0 : index
    %429 = vector.load %arg23[%c0_167, %c0_168] : memref<1x128xf32, #tpu.memory_space<vmem>>, vector<1x128xf32>
    %430 = vector.broadcast %429 : vector<1x128xf32> to vector<8x128xf32>
    %431 = arith.addf %428, %430 : vector<8x128xf32>
    %c0_169 = arith.constant 0 : index
    %c0_170 = arith.constant 0 : index
    %432 = vector.load %arg24[%c0_169, %c0_170] : memref<8x128xf32, #tpu.memory_space<vmem>>, vector<8x128xf32>
    tpu.vector_store %arg24[%c0_169, %c0_170], %431 {strides = array<i32>} : memref<8x128xf32, #tpu.memory_space<vmem>>, vector<8x128xf32>,
    return
  }
}

</mosaic_0001>

<llo_original>
// kernel: tile.0
$region0: #{tile.0}
  %s0 = inlined_call_operand.vmem [shape: s32[2,8], index: 0, kind: input, shape index: {}]
  %s1 = inlined_call_operand.vmem [shape: s32[16,1], index: 1, kind: output, shape index: {}]
  $region1: #{tile.0} parent=0
    #allocation0 [shape = 'u8[4096]{0}', space=vmem, size = 0x1000, scoped, tag = 'scoped mem for input reshape']
    %s3 = sshll.u32 1, 2
    %s4 = ssub.s32 %s3, 1
    %v5 = vld [vmem:[%s0] sm:%s4]
    %6 = vst [vmem:[#allocation0] sm:%s4] %v5
    %v7 = vld [vmem:[#allocation0] sm:$0x3]
    %vm8 = vcmask 7168
    %9 = vst.msk [vmem:[%s1] ss:$8 sm:$0x3] %vm8, %v7
    %v10 = vld [vmem:[#allocation0] sm:$0x3]
    %11 = vrot.lane.b32.xlu0 %v10, 127
    %v12 = vpop.permute.xlu0 %11
    %vm13 = vcmask 7168
    %s14 = scalar_lea.vmem %s1, 1
    %15 = vst.msk [vmem:[%s14] ss:$8 sm:$0x3] %vm13, %v12
    %v16 = vld [vmem:[#allocation0] sm:$0x3]
    %17 = vrot.lane.b32.xlu0 %v16, 126
    %v18 = vpop.permute.xlu0 %17
    %vm19 = vcmask 7168
    %s20 = scalar_lea.vmem %s1, 2
    %21 = vst.msk [vmem:[%s20] ss:$8 sm:$0x3] %vm19, %v18
    %v22 = vld [vmem:[#allocation0] sm:$0x3]
    %23 = vrot.lane.b32.xlu0 %v22, 125
    %v24 = vpop.permute.xlu0 %23
    %vm25 = vcmask 7168
    %s26 = scalar_lea.vmem %s1, 3
    %27 = vst.msk [vmem:[%s26] ss:$8 sm:$0x3] %vm25, %v24
    %v28 = vld [vmem:[#allocation0] sm:$0x3]
    %29 = vrot.lane.b32.xlu0 %v28, 124
    %v30 = vpop.permute.xlu0 %29
    %vm31 = vcmask 7168
    %s32 = scalar_lea.vmem %s1, 4
    %33 = vst.msk [vmem:[%s32] ss:$8 sm:$0x3] %vm31, %v30
    %v34 = vld [vmem:[#allocation0] sm:$0x3]
    %35 = vrot.lane.b32.xlu0 %v34, 123
    %v36 = vpop.permute.xlu0 %35
    %vm37 = vcmask 7168
    %s38 = scalar_lea.vmem %s1, 5
    %39 = vst.msk [vmem:[%s38] ss:$8 sm:$0x3] %vm37, %v36
    %v40 = vld [vmem:[#allocation0] sm:$0x3]
    %41 = vrot.lane.b32.xlu0 %v40, 122
    %v42 = vpop.permute.xlu0 %41
    %vm43 = vcmask 7168
    %s44 = scalar_lea.vmem %s1, 6
    %45 = vst.msk [vmem:[%s44] ss:$8 sm:$0x3] %vm43, %v42
    %v46 = vld [vmem:[#allocation0] sm:$0x3]
    %47 = vrot.lane.b32.xlu0 %v46, 121
    %v48 = vpop.permute.xlu0 %47
    %vm49 = vcmask 7168
    %s50 = scalar_lea.vmem %s1, 7
    %51 = vst.msk [vmem:[%s50] ss:$8 sm:$0x3] %vm49, %v48

// kernel: _lambda_.1
$region0: #{_lambda_.1}
  #allocation0 [shape = 'u32[]', space=smem, size = 0x4, offset = 0x4, fixed_abs, tag = 'smem constant byte address 0x4 - core index']
  #allocation1 [shape = 'u32[144,128]{1,0:T(1,128)}', space=vmem, size = 0x12000, scoped, tag = 'internal scratch']
  %s0 = inlined_call_operand.vmem [shape: s32[16,1], index: 0, kind: input, shape index: {}]
  %s1 = inlined_call_operand.vmem [shape: s32[16,1], index: 1, kind: input, shape index: {}]
  %s2 = inlined_call_operand.vmem [shape: f32[16,16], index: 2, kind: input, shape index: {}]
  %s3 = inlined_call_operand.vmem [shape: bf16[128,32], index: 3, kind: input, shape index: {}]
  %s4 = inlined_call_operand.vmem [shape: bf16[64,32], index: 4, kind: input, shape index: {}]
  %s5 = inlined_call_operand.vmem [shape: f32[1,32], index: 5, kind: input, shape index: {}]
  %s6 = inlined_call_operand.vmem [shape: f32[1,32], index: 6, kind: input, shape index: {}]
  %s7 = inlined_call_operand.vmem [shape: f32[1,32], index: 7, kind: input, shape index: {}]
  %s8 = inlined_call_operand.vmem [shape: bf16[2,32,96], index: 8, kind: input, shape index: {}]
  %s9 = inlined_call_operand.vmem [shape: f32[2,1,96], index: 9, kind: input, shape index: {}]
  %s10 = inlined_call_operand.vmem [shape: bf16[2,32,32], index: 10, kind: input, shape index: {}]
  %s11 = inlined_call_operand.vmem [shape: f32[2,1,32], index: 11, kind: input, shape index: {}]
  %s12 = inlined_call_operand.vmem [shape: f32[2,1,32], index: 12, kind: input, shape index: {}]
  %s13 = inlined_call_operand.vmem [shape: f32[2,1,32], index: 13, kind: input, shape index: {}]
  %s14 = inlined_call_operand.vmem [shape: bf16[2,32,64], index: 14, kind: input, shape index: {}]
  %s15 = inlined_call_operand.vmem [shape: f32[2,1,64], index: 15, kind: input, shape index: {}]
  %s16 = inlined_call_operand.vmem [shape: bf16[2,64,32], index: 16, kind: input, shape index: {}]
  %s17 = inlined_call_operand.vmem [shape: f32[2,1,32], index: 17, kind: input, shape index: {}]
  %s18 = inlined_call_operand.vmem [shape: f32[2,1,32], index: 18, kind: input, shape index: {}]
  %s19 = inlined_call_operand.vmem [shape: f32[2,1,32], index: 19, kind: input, shape index: {}]
  %s20 = inlined_call_operand.vmem [shape: bf16[32,32], index: 20, kind: input, shape index: {}]
  %s21 = inlined_call_operand.vmem [shape: f32[1,32], index: 21, kind: input, shape index: {}]
  %s22 = inlined_call_operand.vmem [shape: bf16[32,128], index: 22, kind: input, shape index: {}]
  %s23 = inlined_call_operand.vmem [shape: f32[1,128], index: 23, kind: input, shape index: {}]
  %s24 = inlined_call_operand.vmem [shape: f32[8,128], index: 24, kind: output, shape index: {}]
  %s25 = sld [smem:[#allocation0]]
  $region106: #{_lambda_.1} parent=0
    _
  %s27 = ssub.s32 1, %s25
  %s28 = scalar_select 0, %s27, %s25
  // Predicated region
  $region2: #{_lambda_.1} parent=0 // pred_check
    _
  $region3: #{_lambda_.1} parent=0 // pred_check_branch
    %30 = sbr.rel (0) target = $region5
  $region4: #{_lambda_.1} parent=0 // pred_region
    _
  $region5: #{_lambda_.1} parent=0 // pred_fallthru
    _
  // Predicated region
  $region6: #{_lambda_.1} parent=0 // pred_check
    _
  $region7: #{_lambda_.1} parent=0 // pred_check_branch
    %32 = sbr.rel (0) target = $region9
  $region8: #{_lambda_.1} parent=0 // pred_region
    _
  $region9: #{_lambda_.1} parent=0 // pred_fallthru
    _
  // Predicated region
  $region10: #{_lambda_.1} parent=0 // pred_check
    _
  $region11: #{_lambda_.1} parent=0 // pred_check_branch
    %34 = sbr.rel (0) target = $region13
  $region12: #{_lambda_.1} parent=0 // pred_region
    _
  $region13: #{_lambda_.1} parent=0 // pred_fallthru
    _
  // Predicated region
  $region14: #{_lambda_.1} parent=0 // pred_check
    _
  $region15: #{_lambda_.1} parent=0 // pred_check_branch
    %36 = sbr.rel (0) target = $region17
  $region16: #{_lambda_.1} parent=0 // pred_region
    _
  $region17: #{_lambda_.1} parent=0 // pred_fallthru
    _
  // Predicated region
  $region18: #{_lambda_.1} parent=0 // pred_check
    _
  $region19: #{_lambda_.1} parent=0 // pred_check_branch
    %38 = sbr.rel (0) target = $region21
  $region20: #{_lambda_.1} parent=0 // pred_region
    _
  $region21: #{_lambda_.1} parent=0 // pred_fallthru
    _
  // Predicated region
  $region22: #{_lambda_.1} parent=0 // pred_check
    _
  $region23: #{_lambda_.1} parent=0 // pred_check_branch
    %40 = sbr.rel (0) target = $region25
  $region24: #{_lambda_.1} parent=0 // pred_region
    _
  $region25: #{_lambda_.1} parent=0 // pred_fallthru
    _
  // Predicated region
  $region26: #{_lambda_.1} parent=0 // pred_check
    _
  $region27: #{_lambda_.1} parent=0 // pred_check_branch
    %42 = sbr.rel (0) target = $region29
  $region28: #{_lambda_.1} parent=0 // pred_region
    _
  $region29: #{_lambda_.1} parent=0 // pred_fallthru
    _
  // Predicated region
  $region30: #{_lambda_.1} parent=0 // pred_check
    _
  $region31: #{_lambda_.1} parent=0 // pred_check_branch
    %44 = sbr.rel (0) target = $region33
  $region32: #{_lambda_.1} parent=0 // pred_region
    _
  $region33: #{_lambda_.1} parent=0 // pred_fallthru
    _
  // Predicated region
  $region34: #{_lambda_.1} parent=0 // pred_check
    _
  $region35: #{_lambda_.1} parent=0 // pred_check_branch
    %46 = sbr.rel (0) target = $region37
  $region36: #{_lambda_.1} parent=0 // pred_region
    _
  $region37: #{_lambda_.1} parent=0 // pred_fallthru
    _
  // Predicated region
  $region38: #{_lambda_.1} parent=0 // pred_check
    _
  $region39: #{_lambda_.1} parent=0 // pred_check_branch
    %48 = sbr.rel (0) target = $region41
  $region40: #{_lambda_.1} parent=0 // pred_region
    _
  $region41: #{_lambda_.1} parent=0 // pred_fallthru
    _
  // Predicated region
  $region42: #{_lambda_.1} parent=0 // pred_check
    _
  $region43: #{_lambda_.1} parent=0 // pred_check_branch
    %50 = sbr.rel (0) target = $region45
  $region44: #{_lambda_.1} parent=0 // pred_region
    _
  $region45: #{_lambda_.1} parent=0 // pred_fallthru
    _
  // Predicated region
  $region46: #{_lambda_.1} parent=0 // pred_check
    _
  $region47: #{_lambda_.1} parent=0 // pred_check_branch
    %52 = sbr.rel (0) target = $region49
  $region48: #{_lambda_.1} parent=0 // pred_region
    _
  $region49: #{_lambda_.1} parent=0 // pred_fallthru
    _
  // Predicated region
  $region50: #{_lambda_.1} parent=0 // pred_check
    _
  $region51: #{_lambda_.1} parent=0 // pred_check_branch
    %54 = sbr.rel (0) target = $region53
  $region52: #{_lambda_.1} parent=0 // pred_region
    _
  $region53: #{_lambda_.1} parent=0 // pred_fallthru
    _
  // Predicated region
  $region54: #{_lambda_.1} parent=0 // pred_check
    _
  $region55: #{_lambda_.1} parent=0 // pred_check_branch
    %56 = sbr.rel (0) target = $region57
  $region56: #{_lambda_.1} parent=0 // pred_region
    _
  $region57: #{_lambda_.1} parent=0 // pred_fallthru
    _
  // Predicated region
  $region58: #{_lambda_.1} parent=0 // pred_check
    _
  $region59: #{_lambda_.1} parent=0 // pred_check_branch
    %58 = sbr.rel (0) target = $region61
  $region60: #{_lambda_.1} parent=0 // pred_region
    _
  $region61: #{_lambda_.1} parent=0 // pred_fallthru
    _
  // Predicated region
  $region62: #{_lambda_.1} parent=0 // pred_check
    _
  $region63: #{_lambda_.1} parent=0 // pred_check_branch
    %60 = sbr.rel (0) target = $region65
  $region64: #{_lambda_.1} parent=0 // pred_region
    _
  $region65: #{_lambda_.1} parent=0 // pred_fallthru
    _
  // Predicated region
  $region66: #{_lambda_.1} parent=0 // pred_check
    _
  $region67: #{_lambda_.1} parent=0 // pred_check_branch
    %62 = sbr.rel (0) target = $region69
  $region68: #{_lambda_.1} parent=0 // pred_region
    _
  $region69: #{_lambda_.1} parent=0 // pred_fallthru
    _
  // Predicated region
  $region70: #{_lambda_.1} parent=0 // pred_check
    _
  $region71: #{_lambda_.1} parent=0 // pred_check_branch
    %64 = sbr.rel (0) target = $region73
  $region72: #{_lambda_.1} parent=0 // pred_region
    _
  $region73: #{_lambda_.1} parent=0 // pred_fallthru
    _
  // Predicated region
  $region74: #{_lambda_.1} parent=0 // pred_check
    _
  $region75: #{_lambda_.1} parent=0 // pred_check_branch
    %66 = sbr.rel (0) target = $region77
  $region76: #{_lambda_.1} parent=0 // pred_region
    _
  $region77: #{_lambda_.1} parent=0 // pred_fallthru
    _
  // Predicated region
  $region78: #{_lambda_.1} parent=0 // pred_check
    _
  $region79: #{_lambda_.1} parent=0 // pred_check_branch
    %68 = sbr.rel (0) target = $region81
  $region80: #{_lambda_.1} parent=0 // pred_region
    _
  $region81: #{_lambda_.1} parent=0 // pred_fallthru
    _
  // Predicated region
  $region82: #{_lambda_.1} parent=0 // pred_check
    _
  $region83: #{_lambda_.1} parent=0 // pred_check_branch
    %70 = sbr.rel (0) target = $region85
  $region84: #{_lambda_.1} parent=0 // pred_region
    _
  $region85: #{_lambda_.1} parent=0 // pred_fallthru
    _
  // Predicated region
  $region86: #{_lambda_.1} parent=0 // pred_check
    _
  $region87: #{_lambda_.1} parent=0 // pred_check_branch
    %72 = sbr.rel (0) target = $region89
  $region88: #{_lambda_.1} parent=0 // pred_region
    _
  $region89: #{_lambda_.1} parent=0 // pred_fallthru
    _
  // Predicated region
  $region90: #{_lambda_.1} parent=0 // pred_check
    _
  $region91: #{_lambda_.1} parent=0 // pred_check_branch
    %74 = sbr.rel (0) target = $region93
  $region92: #{_lambda_.1} parent=0 // pred_region
    _
  $region93: #{_lambda_.1} parent=0 // pred_fallthru
    _
  // Predicated region
  $region94: #{_lambda_.1} parent=0 // pred_check
    _
  $region95: #{_lambda_.1} parent=0 // pred_check_branch
    %76 = sbr.rel (0) target = $region97
  $region96: #{_lambda_.1} parent=0 // pred_region
    _
  $region97: #{_lambda_.1} parent=0 // pred_fallthru
    _
  %v78 = vlaneseq
  %v79 = vand.u32 %v78, 127
  %v80 = vld [vmem:[%s0] sm:$0xff]
  %v81 = vld [vmem:[%s0 + $0x8] sm:$0xff]
  %82 = vset.pattern.permute.xlu0 0
  %83 = vperm.xlu0 %82, %v80
  %v84 = vpop.permute.xlu0 %83
  %85 = vset.pattern.permute.xlu0 0
  %86 = vperm.xlu0 %85, %v81
  %v87 = vpop.permute.xlu0 %86
  %vm88 = vcmp.eq.s32.totalorder %v84, %v79
  %vm89 = vcmp.eq.s32.totalorder %v87, %v79
  %v90 = vsel %vm88, 1, 0
  %v91 = vsel %vm89, 1, 0
  %v92 = vcvt.s32.f32 %v90
  %v93 = vcvt.s32.f32 %v91
  %v94 = vpack.c.bf16 %v93, %v92
  %v95 = vld [vmem:[%s3] sm:$0xf]
  %v96 = vld [vmem:[%s3 + $0x4] sm:$0xf]
  %v97 = vld [vmem:[%s3 + $0x8] sm:$0xf]
  %v98 = vld [vmem:[%s3 + $0xc] sm:$0xf]
  %v99 = vld [vmem:[%s3 + $0x10] sm:$0xf]
  %v100 = vld [vmem:[%s3 + $0x14] sm:$0xf]
  %v101 = vld [vmem:[%s3 + $0x18] sm:$0xf]
  %v102 = vld [vmem:[%s3 + $0x1c] sm:$0xf]
  %v103 = vld [vmem:[%s3 + $0x20] sm:$0xf]
  %v104 = vld [vmem:[%s3 + $0x24] sm:$0xf]
  %v105 = vld [vmem:[%s3 + $0x28] sm:$0xf]
  %v106 = vld [vmem:[%s3 + $0x2c] sm:$0xf]
  %v107 = vld [vmem:[%s3 + $0x30] sm:$0xf]
  %v108 = vld [vmem:[%s3 + $0x34] sm:$0xf]
  %v109 = vld [vmem:[%s3 + $0x38] sm:$0xf]
  %v110 = vld [vmem:[%s3 + $0x3c] sm:$0xf]
  %v111 = vld [vmem:[%s1] sm:$0xff]
  %v112 = vld [vmem:[%s1 + $0x8] sm:$0xff]
  %113 = vset.pattern.permute.xlu0 0
  %114 = vperm.xlu0 %113, %v111
  %v115 = vpop.permute.xlu0 %114
  %116 = vset.pattern.permute.xlu0 0
  %117 = vperm.xlu0 %116, %v112
  %v118 = vpop.permute.xlu0 %117
  %vm119 = vcmp.eq.s32.totalorder %v115, %v79
  %vm120 = vcmp.eq.s32.totalorder %v118, %v79
  %v121 = vsel %vm119, 1, 0
  %v122 = vsel %vm120, 1, 0
  %v123 = vcvt.s32.f32 %v121
  %v124 = vcvt.s32.f32 %v122
  %v125 = vpack.c.bf16 %v124, %v123
  %v126 = vld [vmem:[%s4] sm:$0xf]
  %v127 = vld [vmem:[%s4 + $0x4] sm:$0xf]
  %v128 = vld [vmem:[%s4 + $0x8] sm:$0xf]
  %v129 = vld [vmem:[%s4 + $0xc] sm:$0xf]
  %v130 = vld [vmem:[%s4 + $0x10] sm:$0xf]
  %v131 = vld [vmem:[%s4 + $0x14] sm:$0xf]
  %v132 = vld [vmem:[%s4 + $0x18] sm:$0xf]
  %v133 = vld [vmem:[%s4 + $0x1c] sm:$0xf]
  %v142 = vunpack.c.l.b16 %v126
  %v143 = vunpack.c.l.b16 %v127
  %v144 = vunpack.c.l.b16 %v128
  %v145 = vunpack.c.l.b16 %v129
  %v146 = vunpack.c.l.b16 %v130
  %v147 = vunpack.c.l.b16 %v131
  %v148 = vunpack.c.l.b16 %v132
  %v149 = vunpack.c.l.b16 %v133
  %v150 = vpack.c.b16 %v143, %v142
  %v151 = vpack.c.b16 %v145, %v144
  %v152 = vpack.c.b16 %v147, %v146
  %v153 = vpack.c.b16 %v149, %v148
  %vm158 = vcmask 523264
  %v160 = vsel %vm158, %v125, 0
  %162 = vmatprep.subr.bf16.mxu0 0
  %163 = vmatpush1.bf16.msra.mxu0 0
  %164 = vmatprep.subr.bf16.mxu0 0
  %165 = vmatpush1.bf16.msra.mxu0 0
  %166 = vmatprep.subr.bf16.mxu0 0
  %167 = vmatpush1.bf16.msra.mxu0 0
  %168 = vmatprep.subr.bf16.mxu0 0
  %169 = vmatpush1.bf16.msra.mxu0 0
  %170 = vmatprep.subr.bf16.mxu0 0
  %171 = vmatpush1.bf16.msra.mxu0 %v153
  %172 = vmatprep.subr.bf16.mxu0 0
  %173 = vmatpush1.bf16.msra.mxu0 %v152
  %174 = vmatprep.subr.bf16.mxu0 0
  %175 = vmatpush1.bf16.msra.mxu0 %v151
  %176 = vmatprep.subr.bf16.mxu0 0
  %177 = vmatpush1.bf16.msra.mxu0 %v150
  %178 = vmatprep.subr.bf16.mxu0 0
  %179 = vmatpush2.bf16.msra.mxu0 0
  %180 = vmatprep.subr.bf16.mxu0 0
  %181 = vmatpush2.bf16.msra.mxu0 0
  %182 = vmatprep.subr.bf16.mxu0 0
  %183 = vmatpush2.bf16.msra.mxu0 0
  %184 = vmatprep.subr.bf16.mxu0 0
  %185 = vmatpush2.bf16.msra.mxu0 0
  %186 = vmatprep.subr.bf16.mxu0 0
  %187 = vmatpush2.bf16.msra.mxu0 0
  %188 = vmatprep.subr.bf16.mxu0 0
  %189 = vmatpush2.bf16.msra.mxu0 0
  %190 = vmatprep.subr.bf16.mxu0 0
  %191 = vmatpush2.bf16.msra.mxu0 0
  %192 = vmatprep.subr.bf16.mxu0 0
  %193 = vmatpush2.bf16.msra.mxu0 0
  %194 = vmatprep.mubr.bf16.mxu0 0
  %195 = vmatmul.mubr.bf16.gmra.mxu0 %v160
  %v196 = vpop.f32.mrf.mxu0
  %v197 = vadd.f32 0.0, %v196
  %v198 = vpop.f32.mrf.mxu0
  %v199 = vpop.f32.mrf.mxu0
  %v200 = vadd.f32 0.0, %v199
  %v201 = vpop.f32.mrf.mxu0
  %202 = vdwg.mxu0
  %v219 = vunpack.c.l.b16 %v95
  %v220 = vunpack.c.l.b16 %v96
  %v221 = vunpack.c.l.b16 %v97
  %v222 = vunpack.c.l.b16 %v98
  %v223 = vunpack.c.l.b16 %v99
  %v224 = vunpack.c.l.b16 %v100
  %v225 = vunpack.c.l.b16 %v101
  %v226 = vunpack.c.l.b16 %v102
  %v227 = vunpack.c.l.b16 %v103
  %v228 = vunpack.c.l.b16 %v104
  %v229 = vunpack.c.l.b16 %v105
  %v230 = vunpack.c.l.b16 %v106
  %v231 = vunpack.c.l.b16 %v107
  %v232 = vunpack.c.l.b16 %v108
  %v233 = vunpack.c.l.b16 %v109
  %v234 = vunpack.c.l.b16 %v110
  %v235 = vpack.c.b16 %v220, %v219
  %v236 = vpack.c.b16 %v222, %v221
  %v237 = vpack.c.b16 %v224, %v223
  %v238 = vpack.c.b16 %v226, %v225
  %v239 = vpack.c.b16 %v228, %v227
  %v240 = vpack.c.b16 %v230, %v229
  %v241 = vpack.c.b16 %v232, %v231
  %v242 = vpack.c.b16 %v234, %v233
  %251 = vmatprep.subr.bf16.mxu0 0
  %252 = vmatpush1.bf16.msra.mxu0 %v242
  %253 = vmatprep.subr.bf16.mxu0 0
  %254 = vmatpush1.bf16.msra.mxu0 %v241
  %255 = vmatprep.subr.bf16.mxu0 0
  %256 = vmatpush1.bf16.msra.mxu0 %v240
  %257 = vmatprep.subr.bf16.mxu0 0
  %258 = vmatpush1.bf16.msra.mxu0 %v239
  %259 = vmatprep.subr.bf16.mxu0 0
  %260 = vmatpush1.bf16.msra.mxu0 %v238
  %261 = vmatprep.subr.bf16.mxu0 0
  %262 = vmatpush1.bf16.msra.mxu0 %v237
  %263 = vmatprep.subr.bf16.mxu0 0
  %264 = vmatpush1.bf16.msra.mxu0 %v236
  %265 = vmatprep.subr.bf16.mxu0 0
  %266 = vmatpush1.bf16.msra.mxu0 %v235
  %267 = vmatprep.subr.bf16.mxu0 0
  %268 = vmatpush2.bf16.msra.mxu0 0
  %269 = vmatprep.subr.bf16.mxu0 0
  %270 = vmatpush2.bf16.msra.mxu0 0
  %271 = vmatprep.subr.bf16.mxu0 0
  %272 = vmatpush2.bf16.msra.mxu0 0
  %273 = vmatprep.subr.bf16.mxu0 0
  %274 = vmatpush2.bf16.msra.mxu0 0
  %275 = vmatprep.subr.bf16.mxu0 0
  %276 = vmatpush2.bf16.msra.mxu0 0
  %277 = vmatprep.subr.bf16.mxu0 0
  %278 = vmatpush2.bf16.msra.mxu0 0
  %279 = vmatprep.subr.bf16.mxu0 0
  %280 = vmatpush2.bf16.msra.mxu0 0
  %281 = vmatprep.subr.bf16.mxu0 0
  %282 = vmatpush2.bf16.msra.mxu0 0
  %283 = vmatprep.mubr.bf16.mxu0 0
  %284 = vmatmul.mubr.bf16.gmra.mxu0 %v94
  %v285 = vpop.f32.mrf.mxu0
  %v286 = vadd.f32 %v197, %v285
  %v287 = vpop.f32.mrf.mxu0
  %v288 = vpop.f32.mrf.mxu0
  %v289 = vadd.f32 %v200, %v288
  %v290 = vpop.f32.mrf.mxu0
  %291 = vdwg.mxu0
  %v292 = vld [vmem:[%s5] sm:$0x1]
  %v294 = vlaneseq
  %v295 = vshrl.u32 %v294, 7
  %v296 = vsub.s32 0, %v295
  %v297 = vrot.slane %v292, %v296
  %v299 = vadd.f32 %v286, %v297
  %v300 = vadd.f32 %v289, %v297
  %v301 = vld [vmem:[%s6] sm:$0x1]
  %v302 = vld [vmem:[%s7] sm:$0x1]
  %vm303 = vcmask 261120
  %v304 = vsel %vm303, %v299, 0.0
  %305 = vadd.xlane.f32.xlu0 %v304
  %v306 = vpop.xlane.xlu0 %305
  %v307 = vsel %vm303, %v300, 0.0
  %308 = vadd.xlane.f32.xlu0 %v307
  %v309 = vpop.xlane.xlu0 %308
  %v310 = vrcp.pop 32.0
  %v311 = vmul.f32 %v306, %v310
  %v312 = vmul.f32 %v309, %v310
  %v313 = vsub.f32 %v299, %v311
  %v314 = vsub.f32 %v300, %v312
  %v315 = vmul.f32 %v313, %v313
  %v316 = vmul.f32 %v314, %v314
  %v317 = vsel %vm303, %v315, 0.0
  %318 = vadd.xlane.f32.xlu0 %v317
  %v319 = vpop.xlane.xlu0 %318
  %v320 = vsel %vm303, %v316, 0.0
  %321 = vadd.xlane.f32.xlu0 %v320
  %v322 = vpop.xlane.xlu0 %321
  %v323 = vmul.f32 %v319, %v310
  %v324 = vmul.f32 %v322, %v310
  %v325 = vadd.f32 %v323, 1e-12
  %v326 = vadd.f32 %v324, 1e-12
  %v327 = vrsqrt.pop %v325
  %v328 = vrsqrt.pop %v326
  %v329 = vmul.f32 %v313, %v327
  %v330 = vmul.f32 %v314, %v328
  %v332 = vlaneseq
  %v333 = vshrl.u32 %v332, 7
  %v334 = vsub.s32 0, %v333
  %v335 = vrot.slane %v301, %v334
  %v337 = vmul.f32 %v329, %v335
  %v338 = vmul.f32 %v330, %v335
  %v340 = vlaneseq
  %v341 = vshrl.u32 %v340, 7
  %v342 = vsub.s32 0, %v341
  %v343 = vrot.slane %v302, %v342
  %v345 = vadd.f32 %v337, %v343
  %v346 = vadd.f32 %v338, %v343
  %vm347 = vcmp.ge.s32.totalorder %v79, 0
  %vm348 = vcmp.lt.s32.totalorder %v79, 8
  %vm349 = vmand %vm347, %vm348
  %vm350 = vcmp.ge.s32.totalorder %v79, 8
  %vm351 = vcmp.lt.s32.totalorder %v79, 16
  %vm352 = vmand %vm350, %vm351
  %vm353 = vcmp.ge.s32.totalorder %v79, 16
  %vm354 = vcmp.lt.s32.totalorder %v79, 24
  %vm355 = vmand %vm353, %vm354
  %vm356 = vcmp.ge.s32.totalorder %v79, 24
  %vm357 = vcmp.lt.s32.totalorder %v79, 32
  %vm358 = vmand %vm356, %vm357
  %v359 = vld [vmem:[%s2] sm:$0xff]
  %v360 = vld [vmem:[%s2 + $0x8] sm:$0xff]
  %v361 = vpack.c.bf16 %v346, %v345
  %v362 = vld [vmem:[%s8] sm:$0xf]
  %v363 = vld [vmem:[%s8 + $0x4] sm:$0xf]
  %v364 = vld [vmem:[%s8 + $0x8] sm:$0xf]
  %v365 = vld [vmem:[%s8 + $0xc] sm:$0xf]
  %v366 = vld [vmem:[%s9] sm:$0x1]
  %v368 = vlaneseq
  %v369 = vshrl.u32 %v368, 7
  %v370 = vsub.s32 0, %v369
  %v371 = vrot.slane %v366, %v370
  %v377 = vunpack.c.l.b16 %v362
  %v378 = vunpack.c.l.b16 %v363
  %v379 = vunpack.c.l.b16 %v364
  %v380 = vunpack.c.l.b16 %v365
  %v381 = vpack.c.b16 %v378, %v377
  %v382 = vpack.c.b16 %v380, %v379
  %v386 = vsel %vm303, %v361, 0
  %388 = vmatprep.subr.bf16.mxu0 0
  %389 = vmatpush1.bf16.msra.mxu0 0
  %390 = vmatprep.subr.bf16.mxu0 0
  %391 = vmatpush1.bf16.msra.mxu0 0
  %392 = vmatprep.subr.bf16.mxu0 0
  %393 = vmatpush1.bf16.msra.mxu0 0
  %394 = vmatprep.subr.bf16.mxu0 0
  %395 = vmatpush1.bf16.msra.mxu0 0
  %396 = vmatprep.subr.bf16.mxu0 0
  %397 = vmatpush1.bf16.msra.mxu0 0
  %398 = vmatprep.subr.bf16.mxu0 0
  %399 = vmatpush1.bf16.msra.mxu0 0
  %400 = vmatprep.subr.bf16.mxu0 0
  %401 = vmatpush1.bf16.msra.mxu0 %v382
  %402 = vmatprep.subr.bf16.mxu0 0
  %403 = vmatpush1.bf16.msra.mxu0 %v381
  %404 = vmatprep.subr.bf16.mxu0 0
  %405 = vmatpush2.bf16.msra.mxu0 0
  %406 = vmatprep.subr.bf16.mxu0 0
  %407 = vmatpush2.bf16.msra.mxu0 0
  %408 = vmatprep.subr.bf16.mxu0 0
  %409 = vmatpush2.bf16.msra.mxu0 0
  %410 = vmatprep.subr.bf16.mxu0 0
  %411 = vmatpush2.bf16.msra.mxu0 0
  %412 = vmatprep.subr.bf16.mxu0 0
  %413 = vmatpush2.bf16.msra.mxu0 0
  %414 = vmatprep.subr.bf16.mxu0 0
  %415 = vmatpush2.bf16.msra.mxu0 0
  %416 = vmatprep.subr.bf16.mxu0 0
  %417 = vmatpush2.bf16.msra.mxu0 0
  %418 = vmatprep.subr.bf16.mxu0 0
  %419 = vmatpush2.bf16.msra.mxu0 0
  %420 = vmatprep.mubr.bf16.mxu0 0
  %421 = vmatmul.mubr.bf16.gmra.mxu0 %v386
  %v422 = vpop.f32.mrf.mxu0
  %v423 = vadd.f32 %v371, %v422
  %v424 = vpop.f32.mrf.mxu0
  %v425 = vpop.f32.mrf.mxu0
  %v426 = vadd.f32 %v371, %v425
  %v427 = vpop.f32.mrf.mxu0
  %428 = vdwg.mxu0
  %v429 = vpack.c.bf16 %v426, %v423
  %v430 = vsel %vm349, 1, 0
  %vm431 = vcmp.eq.s32.totalorder %v430, 1
  %v432 = vsel %vm431, %v423, 0.0
  %v433 = vsel %vm431, %v426, 0.0
  %v434 = vsel %vm352, 1, 0
  %vm435 = vcmp.eq.s32.totalorder %v434, 1
  %v436 = vsel %vm435, %v423, 0.0
  %v437 = vsel %vm435, %v426, 0.0
  %v438 = vsel %vm355, 1, 0
  %vm439 = vcmp.eq.s32.totalorder %v438, 1
  %v440 = vsel %vm439, %v423, 0.0
  %v441 = vsel %vm439, %v426, 0.0
  %v442 = vsel %vm358, 1, 0
  %vm443 = vcmp.eq.s32.totalorder %v442, 1
  %v444 = vsel %vm443, %v423, 0.0
  %v445 = vsel %vm443, %v426, 0.0
  %v446 = vpack.c.bf16 %v433, %v432
  %v447 = vpack.c.bf16 %v437, %v436
  %v448 = vpack.c.bf16 %v441, %v440
  %v449 = vpack.c.bf16 %v445, %v444
  %451 = vrot.lane.b32.xlu0 %v429, 96
  %v452 = vpop.permute.xlu0 %451
  %v454 = vsel %vm303, %v446, 0
  %v457 = vsel %vm303, %v447, 0
  %v460 = vsel %vm303, %v448, 0
  %v463 = vsel %vm303, %v449, 0
  %v466 = vsel %vm303, %v452, 0
  %468 = vmatprep.subr.bf16.mxu0 0
  %469 = vmatpush1.bf16.xpose.msra.mxu0 0
  %470 = vmatprep.subr.bf16.mxu0 0
  %471 = vmatpush1.bf16.xpose.msra.mxu0 0
  %472 = vmatprep.subr.bf16.mxu0 0
  %473 = vmatpush1.bf16.xpose.msra.mxu0 0
  %474 = vmatprep.subr.bf16.mxu0 0
  %475 = vmatpush1.bf16.xpose.msra.mxu0 0
  %476 = vmatprep.subr.bf16.mxu0 0
  %477 = vmatpush1.bf16.xpose.msra.mxu0 0
  %478 = vmatprep.subr.bf16.mxu0 0
  %479 = vmatpush1.bf16.xpose.msra.mxu0 0
  %480 = vmatprep.subr.bf16.mxu0 0
  %481 = vmatpush1.bf16.xpose.msra.mxu0 0
  %482 = vmatprep.subr.bf16.mxu0 0
  %483 = vmatpush1.bf16.xpose.msra.mxu0 %v466
  %484 = vmatprep.subr.bf16.mxu0 0
  %485 = vmatpush2.bf16.xpose.msra.mxu0 0
  %486 = vmatprep.subr.bf16.mxu0 0
  %487 = vmatpush2.bf16.xpose.msra.mxu0 0
  %488 = vmatprep.subr.bf16.mxu0 0
  %489 = vmatpush2.bf16.xpose.msra.mxu0 0
  %490 = vmatprep.subr.bf16.mxu0 0
  %491 = vmatpush2.bf16.xpose.msra.mxu0 0
  %492 = vmatprep.subr.bf16.mxu0 0
  %493 = vmatpush2.bf16.xpose.msra.mxu0 0
  %494 = vmatprep.subr.bf16.mxu0 0
  %495 = vmatpush2.bf16.xpose.msra.mxu0 0
  %496 = vmatprep.subr.bf16.mxu0 0
  %497 = vmatpush2.bf16.xpose.msra.mxu0 0
  %498 = vmatprep.subr.bf16.mxu0 0
  %499 = vmatpush2.bf16.xpose.msra.mxu0 0
  %500 = vmatprep.mubr.bf16.mxu0 0
  %501 = vmatmul.mubr.bf16.gmra.mxu0 %v454
  %v502 = vpop.f32.mrf.mxu0
  %v503 = vadd.f32 0.0, %v502
  %v504 = vpop.f32.mrf.mxu0
  %v505 = vpop.f32.mrf.mxu0
  %v506 = vadd.f32 0.0, %v505
  %v507 = vpop.f32.mrf.mxu0
  %508 = vmatprep.mubr.bf16.mxu0 0
  %509 = vmatmul.mubr.bf16.gmra.mxu0 %v457
  %v510 = vpop.f32.mrf.mxu0
  %v511 = vadd.f32 0.0, %v510
  %v512 = vpop.f32.mrf.mxu0
  %v513 = vpop.f32.mrf.mxu0
  %v514 = vadd.f32 0.0, %v513
  %v515 = vpop.f32.mrf.mxu0
  %516 = vmatprep.mubr.bf16.mxu0 0
  %517 = vmatmul.mubr.bf16.gmra.mxu0 %v460
  %v518 = vpop.f32.mrf.mxu0
  %v519 = vadd.f32 0.0, %v518
  %v520 = vpop.f32.mrf.mxu0
  %v521 = vpop.f32.mrf.mxu0
  %v522 = vadd.f32 0.0, %v521
  %v523 = vpop.f32.mrf.mxu0
  %524 = vmatprep.mubr.bf16.mxu0 0
  %525 = vmatmul.mubr.bf16.gmra.mxu0 %v463
  %v526 = vpop.f32.mrf.mxu0
  %v527 = vadd.f32 0.0, %v526
  %v528 = vpop.f32.mrf.mxu0
  %v529 = vpop.f32.mrf.mxu0
  %v530 = vadd.f32 0.0, %v529
  %v531 = vpop.f32.mrf.mxu0
  %532 = vdwg.mxu0
  %v533 = vmul.f32 %v503, 0.35355338
  %v534 = vmul.f32 %v506, 0.35355338
  %v535 = vmul.f32 %v511, 0.35355338
  %v536 = vmul.f32 %v514, 0.35355338
  %v537 = vmul.f32 %v519, 0.35355338
  %v538 = vmul.f32 %v522, 0.35355338
  %v539 = vmul.f32 %v527, 0.35355338
  %v540 = vmul.f32 %v530, 0.35355338
  %v541 = vadd.f32 %v533, %v359
  %v542 = vadd.f32 %v534, %v360
  %v543 = vadd.f32 %v535, %v359
  %v544 = vadd.f32 %v536, %v360
  %v545 = vadd.f32 %v537, %v359
  %v546 = vadd.f32 %v538, %v360
  %v547 = vadd.f32 %v539, %v359
  %v548 = vadd.f32 %v540, %v360
  %vm549 = vcmask 130048
  %v550 = vsel %vm549, %v541, -inf
  %551 = vmax.xlane.f32.xlu0 %v550
  %v552 = vpop.xlane.xlu0 %551
  %v553 = vsel %vm549, %v542, -inf
  %554 = vmax.xlane.f32.xlu0 %v553
  %v555 = vpop.xlane.xlu0 %554
  %v556 = vsel %vm549, %v543, -inf
  %557 = vmax.xlane.f32.xlu0 %v556
  %v558 = vpop.xlane.xlu0 %557
  %v559 = vsel %vm549, %v544, -inf
  %560 = vmax.xlane.f32.xlu0 %v559
  %v561 = vpop.xlane.xlu0 %560
  %v562 = vsel %vm549, %v545, -inf
  %563 = vmax.xlane.f32.xlu0 %v562
  %v564 = vpop.xlane.xlu0 %563
  %v565 = vsel %vm549, %v546, -inf
  %566 = vmax.xlane.f32.xlu0 %v565
  %v567 = vpop.xlane.xlu0 %566
  %v568 = vsel %vm549, %v547, -inf
  %569 = vmax.xlane.f32.xlu0 %v568
  %v570 = vpop.xlane.xlu0 %569
  %v571 = vsel %vm549, %v548, -inf
  %572 = vmax.xlane.f32.xlu0 %v571
  %v573 = vpop.xlane.xlu0 %572
  %v574 = vsub.f32 %v541, %v552
  %v575 = vsub.f32 %v542, %v555
  %v576 = vsub.f32 %v543, %v558
  %v577 = vsub.f32 %v544, %v561
  %v578 = vsub.f32 %v545, %v564
  %v579 = vsub.f32 %v546, %v567
  %v580 = vsub.f32 %v547, %v570
  %v581 = vsub.f32 %v548, %v573
  %v582 = vmul.f32 %v574, 1.442695
  %v583 = vpow.pop %v582
  %v584 = vmul.f32 %v575, 1.442695
  %v585 = vpow.pop %v584
  %v586 = vmul.f32 %v576, 1.442695
  %v587 = vpow.pop %v586
  %v588 = vmul.f32 %v577, 1.442695
  %v589 = vpow.pop %v588
  %v590 = vmul.f32 %v578, 1.442695
  %v591 = vpow.pop %v590
  %v592 = vmul.f32 %v579, 1.442695
  %v593 = vpow.pop %v592
  %v594 = vmul.f32 %v580, 1.442695
  %v595 = vpow.pop %v594
  %v596 = vmul.f32 %v581, 1.442695
  %v597 = vpow.pop %v596
  %v598 = vsel %vm549, %v583, 0.0
  %599 = vadd.xlane.f32.xlu0 %v598
  %v600 = vpop.xlane.xlu0 %599
  %v601 = vsel %vm549, %v585, 0.0
  %602 = vadd.xlane.f32.xlu0 %v601
  %v603 = vpop.xlane.xlu0 %602
  %v604 = vsel %vm549, %v587, 0.0
  %605 = vadd.xlane.f32.xlu0 %v604
  %v606 = vpop.xlane.xlu0 %605
  %v607 = vsel %vm549, %v589, 0.0
  %608 = vadd.xlane.f32.xlu0 %v607
  %v609 = vpop.xlane.xlu0 %608
  %v610 = vsel %vm549, %v591, 0.0
  %611 = vadd.xlane.f32.xlu0 %v610
  %v612 = vpop.xlane.xlu0 %611
  %v613 = vsel %vm549, %v593, 0.0
  %614 = vadd.xlane.f32.xlu0 %v613
  %v615 = vpop.xlane.xlu0 %614
  %v616 = vsel %vm549, %v595, 0.0
  %617 = vadd.xlane.f32.xlu0 %v616
  %v618 = vpop.xlane.xlu0 %617
  %v619 = vsel %vm549, %v597, 0.0
  %620 = vadd.xlane.f32.xlu0 %v619
  %v621 = vpop.xlane.xlu0 %620
  %v622 = vrcp.pop %v600
  %v623 = vrcp.pop %v603
  %v624 = vrcp.pop %v606
  %v625 = vrcp.pop %v609
  %v626 = vrcp.pop %v612
  %v627 = vrcp.pop %v615
  %v628 = vrcp.pop %v618
  %v629 = vrcp.pop %v621
  %v630 = vmul.f32 %v583, %v622
  %v631 = vmul.f32 %v585, %v623
  %v632 = vmul.f32 %v587, %v624
  %v633 = vmul.f32 %v589, %v625
  %v634 = vmul.f32 %v591, %v626
  %v635 = vmul.f32 %v593, %v627
  %v636 = vmul.f32 %v595, %v628
  %v637 = vmul.f32 %v597, %v629
  %v638 = vpack.c.bf16 %v631, %v630
  %v639 = vpack.c.bf16 %v633, %v632
  %v640 = vpack.c.bf16 %v635, %v634
  %v641 = vpack.c.bf16 %v637, %v636
  %642 = vrot.lane.b32.xlu0 %v429, 64
  %v643 = vpop.permute.xlu0 %642
  %v646 = vsel %vm549, %v638, 0
  %v649 = vsel %vm549, %v639, 0
  %v652 = vsel %vm549, %v640, 0
  %v655 = vsel %vm549, %v641, 0
  %657 = vmatprep.subr.bf16.mxu0 0
  %658 = vmatpush1.bf16.msra.mxu0 0
  %659 = vmatprep.subr.bf16.mxu0 0
  %660 = vmatpush1.bf16.msra.mxu0 0
  %661 = vmatprep.subr.bf16.mxu0 0
  %662 = vmatpush1.bf16.msra.mxu0 0
  %663 = vmatprep.subr.bf16.mxu0 0
  %664 = vmatpush1.bf16.msra.mxu0 0
  %665 = vmatprep.subr.bf16.mxu0 0
  %666 = vmatpush1.bf16.msra.mxu0 0
  %667 = vmatprep.subr.bf16.mxu0 0
  %668 = vmatpush1.bf16.msra.mxu0 0
  %669 = vmatprep.subr.bf16.mxu0 0
  %670 = vmatpush1.bf16.msra.mxu0 0
  %671 = vmatprep.subr.bf16.mxu0 0
  %672 = vmatpush1.bf16.msra.mxu0 %v643
  %673 = vmatprep.subr.bf16.mxu0 0
  %674 = vmatpush2.bf16.msra.mxu0 0
  %675 = vmatprep.subr.bf16.mxu0 0
  %676 = vmatpush2.bf16.msra.mxu0 0
  %677 = vmatprep.subr.bf16.mxu0 0
  %678 = vmatpush2.bf16.msra.mxu0 0
  %679 = vmatprep.subr.bf16.mxu0 0
  %680 = vmatpush2.bf16.msra.mxu0 0
  %681 = vmatprep.subr.bf16.mxu0 0
  %682 = vmatpush2.bf16.msra.mxu0 0
  %683 = vmatprep.subr.bf16.mxu0 0
  %684 = vmatpush2.bf16.msra.mxu0 0
  %685 = vmatprep.subr.bf16.mxu0 0
  %686 = vmatpush2.bf16.msra.mxu0 0
  %687 = vmatprep.subr.bf16.mxu0 0
  %688 = vmatpush2.bf16.msra.mxu0 0
  %689 = vmatprep.mubr.bf16.mxu0 0
  %690 = vmatmul.mubr.bf16.gmra.mxu0 %v646
  %v691 = vpop.f32.mrf.mxu0
  %v692 = vadd.f32 0.0, %v691
  %v693 = vpop.f32.mrf.mxu0
  %v694 = vpop.f32.mrf.mxu0
  %v695 = vadd.f32 0.0, %v694
  %v696 = vpop.f32.mrf.mxu0
  %697 = vmatprep.mubr.bf16.mxu0 0
  %698 = vmatmul.mubr.bf16.gmra.mxu0 %v649
  %v699 = vpop.f32.mrf.mxu0
  %v700 = vadd.f32 0.0, %v699
  %v701 = vpop.f32.mrf.mxu0
  %v702 = vpop.f32.mrf.mxu0
  %v703 = vadd.f32 0.0, %v702
  %v704 = vpop.f32.mrf.mxu0
  %705 = vmatprep.mubr.bf16.mxu0 0
  %706 = vmatmul.mubr.bf16.gmra.mxu0 %v652
  %v707 = vpop.f32.mrf.mxu0
  %v708 = vadd.f32 0.0, %v707
  %v709 = vpop.f32.mrf.mxu0
  %v710 = vpop.f32.mrf.mxu0
  %v711 = vadd.f32 0.0, %v710
  %v712 = vpop.f32.mrf.mxu0
  %713 = vmatprep.mubr.bf16.mxu0 0
  %714 = vmatmul.mubr.bf16.gmra.mxu0 %v655
  %v715 = vpop.f32.mrf.mxu0
  %v716 = vadd.f32 0.0, %v715
  %v717 = vpop.f32.mrf.mxu0
  %v718 = vpop.f32.mrf.mxu0
  %v719 = vadd.f32 0.0, %v718
  %v720 = vpop.f32.mrf.mxu0
  %721 = vdwg.mxu0
  %v722 = vsel %vm431, %v692, 0.0
  %v723 = vsel %vm431, %v695, 0.0
  %v724 = vsel %vm435, %v700, 0.0
  %v725 = vsel %vm435, %v703, 0.0
  %v726 = vadd.f32 %v722, %v724
  %v727 = vadd.f32 %v723, %v725
  %v728 = vsel %vm439, %v708, 0.0
  %v729 = vsel %vm439, %v711, 0.0
  %v730 = vadd.f32 %v726, %v728
  %v731 = vadd.f32 %v727, %v729
  %v732 = vsel %vm443, %v716, 0.0
  %v733 = vsel %vm443, %v719, 0.0
  %v734 = vadd.f32 %v730, %v732
  %v735 = vadd.f32 %v731, %v733
  %v736 = vpack.c.bf16 %v735, %v734
  %v737 = vld [vmem:[%s10] sm:$0xf]
  %v738 = vld [vmem:[%s10 + $0x4] sm:$0xf]
  %v739 = vld [vmem:[%s10 + $0x8] sm:$0xf]
  %v740 = vld [vmem:[%s10 + $0xc] sm:$0xf]
  %v741 = vld [vmem:[%s11] sm:$0x1]
  %v743 = vlaneseq
  %v744 = vshrl.u32 %v743, 7
  %v745 = vsub.s32 0, %v744
  %v746 = vrot.slane %v741, %v745
  %v752 = vunpack.c.l.b16 %v737
  %v753 = vunpack.c.l.b16 %v738
  %v754 = vunpack.c.l.b16 %v739
  %v755 = vunpack.c.l.b16 %v740
  %v756 = vpack.c.b16 %v753, %v752
  %v757 = vpack.c.b16 %v755, %v754
  %v761 = vsel %vm303, %v736, 0
  %763 = vmatprep.subr.bf16.mxu0 0
  %764 = vmatpush1.bf16.msra.mxu0 0
  %765 = vmatprep.subr.bf16.mxu0 0
  %766 = vmatpush1.bf16.msra.mxu0 0
  %767 = vmatprep.subr.bf16.mxu0 0
  %768 = vmatpush1.bf16.msra.mxu0 0
  %769 = vmatprep.subr.bf16.mxu0 0
  %770 = vmatpush1.bf16.msra.mxu0 0
  %771 = vmatprep.subr.bf16.mxu0 0
  %772 = vmatpush1.bf16.msra.mxu0 0
  %773 = vmatprep.subr.bf16.mxu0 0
  %774 = vmatpush1.bf16.msra.mxu0 0
  %775 = vmatprep.subr.bf16.mxu0 0
  %776 = vmatpush1.bf16.msra.mxu0 %v757
  %777 = vmatprep.subr.bf16.mxu0 0
  %778 = vmatpush1.bf16.msra.mxu0 %v756
  %779 = vmatprep.subr.bf16.mxu0 0
  %780 = vmatpush2.bf16.msra.mxu0 0
  %781 = vmatprep.subr.bf16.mxu0 0
  %782 = vmatpush2.bf16.msra.mxu0 0
  %783 = vmatprep.subr.bf16.mxu0 0
  %784 = vmatpush2.bf16.msra.mxu0 0
  %785 = vmatprep.subr.bf16.mxu0 0
  %786 = vmatpush2.bf16.msra.mxu0 0
  %787 = vmatprep.subr.bf16.mxu0 0
  %788 = vmatpush2.bf16.msra.mxu0 0
  %789 = vmatprep.subr.bf16.mxu0 0
  %790 = vmatpush2.bf16.msra.mxu0 0
  %791 = vmatprep.subr.bf16.mxu0 0
  %792 = vmatpush2.bf16.msra.mxu0 0
  %793 = vmatprep.subr.bf16.mxu0 0
  %794 = vmatpush2.bf16.msra.mxu0 0
  %795 = vmatprep.mubr.bf16.mxu0 0
  %796 = vmatmul.mubr.bf16.gmra.mxu0 %v761
  %v797 = vpop.f32.mrf.mxu0
  %v798 = vadd.f32 %v746, %v797
  %v799 = vpop.f32.mrf.mxu0
  %v800 = vpop.f32.mrf.mxu0
  %v801 = vadd.f32 %v746, %v800
  %v802 = vpop.f32.mrf.mxu0
  %803 = vdwg.mxu0
  %v804 = vadd.f32 %v798, %v345
  %v805 = vadd.f32 %v801, %v346
  %v806 = vld [vmem:[%s12] sm:$0x1]
  %v807 = vld [vmem:[%s13] sm:$0x1]
  %v808 = vsel %vm303, %v804, 0.0
  %809 = vadd.xlane.f32.xlu0 %v808
  %v810 = vpop.xlane.xlu0 %809
  %v811 = vsel %vm303, %v805, 0.0
  %812 = vadd.xlane.f32.xlu0 %v811
  %v813 = vpop.xlane.xlu0 %812
  %v814 = vmul.f32 %v810, %v310
  %v815 = vmul.f32 %v813, %v310
  %v816 = vsub.f32 %v804, %v814
  %v817 = vsub.f32 %v805, %v815
  %v818 = vmul.f32 %v816, %v816
  %v819 = vmul.f32 %v817, %v817
  %v820 = vsel %vm303, %v818, 0.0
  %821 = vadd.xlane.f32.xlu0 %v820
  %v822 = vpop.xlane.xlu0 %821
  %v823 = vsel %vm303, %v819, 0.0
  %824 = vadd.xlane.f32.xlu0 %v823
  %v825 = vpop.xlane.xlu0 %824
  %v826 = vmul.f32 %v822, %v310
  %v827 = vmul.f32 %v825, %v310
  %v828 = vadd.f32 %v826, 1e-12
  %v829 = vadd.f32 %v827, 1e-12
  %v830 = vrsqrt.pop %v828
  %v831 = vrsqrt.pop %v829
  %v832 = vmul.f32 %v816, %v830
  %v833 = vmul.f32 %v817, %v831
  %v835 = vlaneseq
  %v836 = vshrl.u32 %v835, 7
  %v837 = vsub.s32 0, %v836
  %v838 = vrot.slane %v806, %v837
  %v840 = vmul.f32 %v832, %v838
  %v841 = vmul.f32 %v833, %v838
  %v843 = vlaneseq
  %v844 = vshrl.u32 %v843, 7
  %v845 = vsub.s32 0, %v844
  %v846 = vrot.slane %v807, %v845
  %v848 = vadd.f32 %v840, %v846
  %v849 = vadd.f32 %v841, %v846
  %v850 = vpack.c.bf16 %v849, %v848
  %v851 = vld [vmem:[%s14] sm:$0xf]
  %v852 = vld [vmem:[%s14 + $0x4] sm:$0xf]
  %v853 = vld [vmem:[%s14 + $0x8] sm:$0xf]
  %v854 = vld [vmem:[%s14 + $0xc] sm:$0xf]
  %v855 = vld [vmem:[%s15] sm:$0x1]
  %v857 = vlaneseq
  %v858 = vshrl.u32 %v857, 7
  %v859 = vsub.s32 0, %v858
  %v860 = vrot.slane %v855, %v859
  %v866 = vunpack.c.l.b16 %v851
  %v867 = vunpack.c.l.b16 %v852
  %v868 = vunpack.c.l.b16 %v853
  %v869 = vunpack.c.l.b16 %v854
  %v870 = vpack.c.b16 %v867, %v866
  %v871 = vpack.c.b16 %v869, %v868
  %v875 = vsel %vm303, %v850, 0
  %877 = vmatprep.subr.bf16.mxu0 0
  %878 = vmatpush1.bf16.msra.mxu0 0
  %879 = vmatprep.subr.bf16.mxu0 0
  %880 = vmatpush1.bf16.msra.mxu0 0
  %881 = vmatprep.subr.bf16.mxu0 0
  %882 = vmatpush1.bf16.msra.mxu0 0
  %883 = vmatprep.subr.bf16.mxu0 0
  %884 = vmatpush1.bf16.msra.mxu0 0
  %885 = vmatprep.subr.bf16.mxu0 0
  %886 = vmatpush1.bf16.msra.mxu0 0
  %887 = vmatprep.subr.bf16.mxu0 0
  %888 = vmatpush1.bf16.msra.mxu0 0
  %889 = vmatprep.subr.bf16.mxu0 0
  %890 = vmatpush1.bf16.msra.mxu0 %v871
  %891 = vmatprep.subr.bf16.mxu0 0
  %892 = vmatpush1.bf16.msra.mxu0 %v870
  %893 = vmatprep.subr.bf16.mxu0 0
  %894 = vmatpush2.bf16.msra.mxu0 0
  %895 = vmatprep.subr.bf16.mxu0 0
  %896 = vmatpush2.bf16.msra.mxu0 0
  %897 = vmatprep.subr.bf16.mxu0 0
  %898 = vmatpush2.bf16.msra.mxu0 0
  %899 = vmatprep.subr.bf16.mxu0 0
  %900 = vmatpush2.bf16.msra.mxu0 0
  %901 = vmatprep.subr.bf16.mxu0 0
  %902 = vmatpush2.bf16.msra.mxu0 0
  %903 = vmatprep.subr.bf16.mxu0 0
  %904 = vmatpush2.bf16.msra.mxu0 0
  %905 = vmatprep.subr.bf16.mxu0 0
  %906 = vmatpush2.bf16.msra.mxu0 0
  %907 = vmatprep.subr.bf16.mxu0 0
  %908 = vmatpush2.bf16.msra.mxu0 0
  %909 = vmatprep.mubr.bf16.mxu0 0
  %910 = vmatmul.mubr.bf16.gmra.mxu0 %v875
  %v911 = vpop.f32.mrf.mxu0
  %v912 = vadd.f32 %v860, %v911
  %v913 = vpop.f32.mrf.mxu0
  %v914 = vpop.f32.mrf.mxu0
  %v915 = vadd.f32 %v860, %v914
  %v916 = vpop.f32.mrf.mxu0
  %917 = vdwg.mxu0
  %v918 = vmul.f32 %v912, 0.5
  %v919 = vmul.f32 %v915, 0.5
  %v920 = vmul.f32 %v912, 0.044715
  %v921 = vmul.f32 %v915, 0.044715
  %v922 = vmul.f32 %v920, %v912
  %v923 = vmul.f32 %v921, %v915
  %v924 = vmul.f32 %v922, %v912
  %v925 = vmul.f32 %v923, %v915
  %v926 = vadd.f32 %v912, %v924
  %v927 = vadd.f32 %v915, %v925
  %v928 = vmul.f32 %v926, 0.7978846
  %v929 = vmul.f32 %v927, 0.7978846
  %v930 = vtanh.pop %v928
  %v931 = vtanh.pop %v929
  %v932 = vadd.f32 %v930, 1.0
  %v933 = vadd.f32 %v931, 1.0
  %v934 = vmul.f32 %v918, %v932
  %v935 = vmul.f32 %v919, %v933
  %v936 = vpack.c.bf16 %v935, %v934
  %v937 = vld [vmem:[%s16] sm:$0xf]
  %v938 = vld [vmem:[%s16 + $0x4] sm:$0xf]
  %v939 = vld [vmem:[%s16 + $0x8] sm:$0xf]
  %v940 = vld [vmem:[%s16 + $0xc] sm:$0xf]
  %v941 = vld [vmem:[%s16 + $0x10] sm:$0xf]
  %v942 = vld [vmem:[%s16 + $0x14] sm:$0xf]
  %v943 = vld [vmem:[%s16 + $0x18] sm:$0xf]
  %v944 = vld [vmem:[%s16 + $0x1c] sm:$0xf]
  %v945 = vld [vmem:[%s17] sm:$0x1]
  %v947 = vlaneseq
  %v948 = vshrl.u32 %v947, 7
  %v949 = vsub.s32 0, %v948
  %v950 = vrot.slane %v945, %v949
  %v960 = vunpack.c.l.b16 %v937
  %v961 = vunpack.c.l.b16 %v938
  %v962 = vunpack.c.l.b16 %v939
  %v963 = vunpack.c.l.b16 %v940
  %v964 = vunpack.c.l.b16 %v941
  %v965 = vunpack.c.l.b16 %v942
  %v966 = vunpack.c.l.b16 %v943
  %v967 = vunpack.c.l.b16 %v944
  %v968 = vpack.c.b16 %v961, %v960
  %v969 = vpack.c.b16 %v963, %v962
  %v970 = vpack.c.b16 %v965, %v964
  %v971 = vpack.c.b16 %v967, %v966
  %v977 = vsel %vm158, %v936, 0
  %979 = vmatprep.subr.bf16.mxu0 0
  %980 = vmatpush1.bf16.msra.mxu0 0
  %981 = vmatprep.subr.bf16.mxu0 0
  %982 = vmatpush1.bf16.msra.mxu0 0
  %983 = vmatprep.subr.bf16.mxu0 0
  %984 = vmatpush1.bf16.msra.mxu0 0
  %985 = vmatprep.subr.bf16.mxu0 0
  %986 = vmatpush1.bf16.msra.mxu0 0
  %987 = vmatprep.subr.bf16.mxu0 0
  %988 = vmatpush1.bf16.msra.mxu0 %v971
  %989 = vmatprep.subr.bf16.mxu0 0
  %990 = vmatpush1.bf16.msra.mxu0 %v970
  %991 = vmatprep.subr.bf16.mxu0 0
  %992 = vmatpush1.bf16.msra.mxu0 %v969
  %993 = vmatprep.subr.bf16.mxu0 0
  %994 = vmatpush1.bf16.msra.mxu0 %v968
  %995 = vmatprep.subr.bf16.mxu0 0
  %996 = vmatpush2.bf16.msra.mxu0 0
  %997 = vmatprep.subr.bf16.mxu0 0
  %998 = vmatpush2.bf16.msra.mxu0 0
  %999 = vmatprep.subr.bf16.mxu0 0
  %1000 = vmatpush2.bf16.msra.mxu0 0
  %1001 = vmatprep.subr.bf16.mxu0 0
  %1002 = vmatpush2.bf16.msra.mxu0 0
  %1003 = vmatprep.subr.bf16.mxu0 0
  %1004 = vmatpush2.bf16.msra.mxu0 0
  %1005 = vmatprep.subr.bf16.mxu0 0
  %1006 = vmatpush2.bf16.msra.mxu0 0
  %1007 = vmatprep.subr.bf16.mxu0 0
  %1008 = vmatpush2.bf16.msra.mxu0 0
  %1009 = vmatprep.subr.bf16.mxu0 0
  %1010 = vmatpush2.bf16.msra.mxu0 0
  %1011 = vmatprep.mubr.bf16.mxu0 0
  %1012 = vmatmul.mubr.bf16.gmra.mxu0 %v977
  %v1013 = vpop.f32.mrf.mxu0
  %v1014 = vadd.f32 %v950, %v1013
  %v1015 = vpop.f32.mrf.mxu0
  %v1016 = vpop.f32.mrf.mxu0
  %v1017 = vadd.f32 %v950, %v1016
  %v1018 = vpop.f32.mrf.mxu0
  %1019 = vdwg.mxu0
  %v1020 = vadd.f32 %v1014, %v848
  %v1021 = vadd.f32 %v1017, %v849
  %v1022 = vld [vmem:[%s18] sm:$0x1]
  %v1023 = vld [vmem:[%s19] sm:$0x1]
  %v1024 = vsel %vm303, %v1020, 0.0
  %1025 = vadd.xlane.f32.xlu0 %v1024
  %v1026 = vpop.xlane.xlu0 %1025
  %v1027 = vsel %vm303, %v1021, 0.0
  %1028 = vadd.xlane.f32.xlu0 %v1027
  %v1029 = vpop.xlane.xlu0 %1028
  %v1030 = vmul.f32 %v1026, %v310
  %v1031 = vmul.f32 %v1029, %v310
  %v1032 = vsub.f32 %v1020, %v1030
  %v1033 = vsub.f32 %v1021, %v1031
  %v1034 = vmul.f32 %v1032, %v1032
  %v1035 = vmul.f32 %v1033, %v1033
  %v1036 = vsel %vm303, %v1034, 0.0
  %1037 = vadd.xlane.f32.xlu0 %v1036
  %v1038 = vpop.xlane.xlu0 %1037
  %v1039 = vsel %vm303, %v1035, 0.0
  %1040 = vadd.xlane.f32.xlu0 %v1039
  %v1041 = vpop.xlane.xlu0 %1040
  %v1042 = vmul.f32 %v1038, %v310
  %v1043 = vmul.f32 %v1041, %v310
  %v1044 = vadd.f32 %v1042, 1e-12
  %v1045 = vadd.f32 %v1043, 1e-12
  %v1046 = vrsqrt.pop %v1044
  %v1047 = vrsqrt.pop %v1045
  %v1048 = vmul.f32 %v1032, %v1046
  %v1049 = vmul.f32 %v1033, %v1047
  %v1051 = vlaneseq
  %v1052 = vshrl.u32 %v1051, 7
  %v1053 = vsub.s32 0, %v1052
  %v1054 = vrot.slane %v1022, %v1053
  %v1056 = vmul.f32 %v1048, %v1054
  %v1057 = vmul.f32 %v1049, %v1054
  %v1059 = vlaneseq
  %v1060 = vshrl.u32 %v1059, 7
  %v1061 = vsub.s32 0, %v1060
  %v1062 = vrot.slane %v1023, %v1061
  %v1064 = vadd.f32 %v1056, %v1062
  %v1065 = vadd.f32 %v1057, %v1062
  %v1066 = vpack.c.bf16 %v1065, %v1064
  %s1067 = scalar_lea.vmem %s8, 16
  %v1068 = vld [vmem:[%s1067] sm:$0xf]
  %v1069 = vld [vmem:[%s1067 + $0x4] sm:$0xf]
  %v1070 = vld [vmem:[%s1067 + $0x8] sm:$0xf]
  %v1071 = vld [vmem:[%s1067 + $0xc] sm:$0xf]
  %s1072 = scalar_lea.vmem %s9, 1
  %v1073 = vld [vmem:[%s1072] sm:$0x1]
  %v1075 = vlaneseq
  %v1076 = vshrl.u32 %v1075, 7
  %v1077 = vsub.s32 0, %v1076
  %v1078 = vrot.slane %v1073, %v1077
  %v1084 = vunpack.c.l.b16 %v1068
  %v1085 = vunpack.c.l.b16 %v1069
  %v1086 = vunpack.c.l.b16 %v1070
  %v1087 = vunpack.c.l.b16 %v1071
  %v1088 = vpack.c.b16 %v1085, %v1084
  %v1089 = vpack.c.b16 %v1087, %v1086
  %v1093 = vsel %vm303, %v1066, 0
  %1095 = vmatprep.subr.bf16.mxu0 0
  %1096 = vmatpush1.bf16.msra.mxu0 0
  %1097 = vmatprep.subr.bf16.mxu0 0
  %1098 = vmatpush1.bf16.msra.mxu0 0
  %1099 = vmatprep.subr.bf16.mxu0 0
  %1100 = vmatpush1.bf16.msra.mxu0 0
  %1101 = vmatprep.subr.bf16.mxu0 0
  %1102 = vmatpush1.bf16.msra.mxu0 0
  %1103 = vmatprep.subr.bf16.mxu0 0
  %1104 = vmatpush1.bf16.msra.mxu0 0
  %1105 = vmatprep.subr.bf16.mxu0 0
  %1106 = vmatpush1.bf16.msra.mxu0 0
  %1107 = vmatprep.subr.bf16.mxu0 0
  %1108 = vmatpush1.bf16.msra.mxu0 %v1089
  %1109 = vmatprep.subr.bf16.mxu0 0
  %1110 = vmatpush1.bf16.msra.mxu0 %v1088
  %1111 = vmatprep.subr.bf16.mxu0 0
  %1112 = vmatpush2.bf16.msra.mxu0 0
  %1113 = vmatprep.subr.bf16.mxu0 0
  %1114 = vmatpush2.bf16.msra.mxu0 0
  %1115 = vmatprep.subr.bf16.mxu0 0
  %1116 = vmatpush2.bf16.msra.mxu0 0
  %1117 = vmatprep.subr.bf16.mxu0 0
  %1118 = vmatpush2.bf16.msra.mxu0 0
  %1119 = vmatprep.subr.bf16.mxu0 0
  %1120 = vmatpush2.bf16.msra.mxu0 0
  %1121 = vmatprep.subr.bf16.mxu0 0
  %1122 = vmatpush2.bf16.msra.mxu0 0
  %1123 = vmatprep.subr.bf16.mxu0 0
  %1124 = vmatpush2.bf16.msra.mxu0 0
  %1125 = vmatprep.subr.bf16.mxu0 0
  %1126 = vmatpush2.bf16.msra.mxu0 0
  %1127 = vmatprep.mubr.bf16.mxu0 0
  %1128 = vmatmul.mubr.bf16.gmra.mxu0 %v1093
  %v1129 = vpop.f32.mrf.mxu0
  %v1130 = vadd.f32 %v1078, %v1129
  %v1131 = vpop.f32.mrf.mxu0
  %v1132 = vpop.f32.mrf.mxu0
  %v1133 = vadd.f32 %v1078, %v1132
  %v1134 = vpop.f32.mrf.mxu0
  %1135 = vdwg.mxu0
  %v1136 = vpack.c.bf16 %v1133, %v1130
  %v1137 = vsel %vm431, %v1130, 0.0
  %v1138 = vsel %vm431, %v1133, 0.0
  %v1139 = vsel %vm435, %v1130, 0.0
  %v1140 = vsel %vm435, %v1133, 0.0
  %v1141 = vsel %vm439, %v1130, 0.0
  %v1142 = vsel %vm439, %v1133, 0.0
  %v1143 = vsel %vm443, %v1130, 0.0
  %v1144 = vsel %vm443, %v1133, 0.0
  %v1145 = vpack.c.bf16 %v1138, %v1137
  %v1146 = vpack.c.bf16 %v1140, %v1139
  %v1147 = vpack.c.bf16 %v1142, %v1141
  %v1148 = vpack.c.bf16 %v1144, %v1143
  %1150 = vrot.lane.b32.xlu0 %v1136, 96
  %v1151 = vpop.permute.xlu0 %1150
  %v1153 = vsel %vm303, %v1145, 0
  %v1156 = vsel %vm303, %v1146, 0
  %v1159 = vsel %vm303, %v1147, 0
  %v1162 = vsel %vm303, %v1148, 0
  %v1165 = vsel %vm303, %v1151, 0
  %1167 = vmatprep.subr.bf16.mxu0 0
  %1168 = vmatpush1.bf16.xpose.msra.mxu0 0
  %1169 = vmatprep.subr.bf16.mxu0 0
  %1170 = vmatpush1.bf16.xpose.msra.mxu0 0
  %1171 = vmatprep.subr.bf16.mxu0 0
  %1172 = vmatpush1.bf16.xpose.msra.mxu0 0
  %1173 = vmatprep.subr.bf16.mxu0 0
  %1174 = vmatpush1.bf16.xpose.msra.mxu0 0
  %1175 = vmatprep.subr.bf16.mxu0 0
  %1176 = vmatpush1.bf16.xpose.msra.mxu0 0
  %1177 = vmatprep.subr.bf16.mxu0 0
  %1178 = vmatpush1.bf16.xpose.msra.mxu0 0
  %1179 = vmatprep.subr.bf16.mxu0 0
  %1180 = vmatpush1.bf16.xpose.msra.mxu0 0
  %1181 = vmatprep.subr.bf16.mxu0 0
  %1182 = vmatpush1.bf16.xpose.msra.mxu0 %v1165
  %1183 = vmatprep.subr.bf16.mxu0 0
  %1184 = vmatpush2.bf16.xpose.msra.mxu0 0
  %1185 = vmatprep.subr.bf16.mxu0 0
  %1186 = vmatpush2.bf16.xpose.msra.mxu0 0
  %1187 = vmatprep.subr.bf16.mxu0 0
  %1188 = vmatpush2.bf16.xpose.msra.mxu0 0
  %1189 = vmatprep.subr.bf16.mxu0 0
  %1190 = vmatpush2.bf16.xpose.msra.mxu0 0
  %1191 = vmatprep.subr.bf16.mxu0 0
  %1192 = vmatpush2.bf16.xpose.msra.mxu0 0
  %1193 = vmatprep.subr.bf16.mxu0 0
  %1194 = vmatpush2.bf16.xpose.msra.mxu0 0
  %1195 = vmatprep.subr.bf16.mxu0 0
  %1196 = vmatpush2.bf16.xpose.msra.mxu0 0
  %1197 = vmatprep.subr.bf16.mxu0 0
  %1198 = vmatpush2.bf16.xpose.msra.mxu0 0
  %1199 = vmatprep.mubr.bf16.mxu0 0
  %1200 = vmatmul.mubr.bf16.gmra.mxu0 %v1153
  %v1201 = vpop.f32.mrf.mxu0
  %v1202 = vadd.f32 0.0, %v1201
  %v1203 = vpop.f32.mrf.mxu0
  %v1204 = vpop.f32.mrf.mxu0
  %v1205 = vadd.f32 0.0, %v1204
  %v1206 = vpop.f32.mrf.mxu0
  %1207 = vmatprep.mubr.bf16.mxu0 0
  %1208 = vmatmul.mubr.bf16.gmra.mxu0 %v1156
  %v1209 = vpop.f32.mrf.mxu0
  %v1210 = vadd.f32 0.0, %v1209
  %v1211 = vpop.f32.mrf.mxu0
  %v1212 = vpop.f32.mrf.mxu0
  %v1213 = vadd.f32 0.0, %v1212
  %v1214 = vpop.f32.mrf.mxu0
  %1215 = vmatprep.mubr.bf16.mxu0 0
  %1216 = vmatmul.mubr.bf16.gmra.mxu0 %v1159
  %v1217 = vpop.f32.mrf.mxu0
  %v1218 = vadd.f32 0.0, %v1217
  %v1219 = vpop.f32.mrf.mxu0
  %v1220 = vpop.f32.mrf.mxu0
  %v1221 = vadd.f32 0.0, %v1220
  %v1222 = vpop.f32.mrf.mxu0
  %1223 = vmatprep.mubr.bf16.mxu0 0
  %1224 = vmatmul.mubr.bf16.gmra.mxu0 %v1162
  %v1225 = vpop.f32.mrf.mxu0
  %v1226 = vadd.f32 0.0, %v1225
  %v1227 = vpop.f32.mrf.mxu0
  %v1228 = vpop.f32.mrf.mxu0
  %v1229 = vadd.f32 0.0, %v1228
  %v1230 = vpop.f32.mrf.mxu0
  %1231 = vdwg.mxu0
  %v1232 = vmul.f32 %v1202, 0.35355338
  %v1233 = vmul.f32 %v1205, 0.35355338
  %v1234 = vmul.f32 %v1210, 0.35355338
  %v1235 = vmul.f32 %v1213, 0.35355338
  %v1236 = vmul.f32 %v1218, 0.35355338
  %v1237 = vmul.f32 %v1221, 0.35355338
  %v1238 = vmul.f32 %v1226, 0.35355338
  %v1239 = vmul.f32 %v1229, 0.35355338
  %v1240 = vadd.f32 %v1232, %v359
  %v1241 = vadd.f32 %v1233, %v360
  %v1242 = vadd.f32 %v1234, %v359
  %v1243 = vadd.f32 %v1235, %v360
  %v1244 = vadd.f32 %v1236, %v359
  %v1245 = vadd.f32 %v1237, %v360
  %v1246 = vadd.f32 %v1238, %v359
  %v1247 = vadd.f32 %v1239, %v360
  %v1248 = vsel %vm549, %v1240, -inf
  %1249 = vmax.xlane.f32.xlu0 %v1248
  %v1250 = vpop.xlane.xlu0 %1249
  %v1251 = vsel %vm549, %v1241, -inf
  %1252 = vmax.xlane.f32.xlu0 %v1251
  %v1253 = vpop.xlane.xlu0 %1252
  %v1254 = vsel %vm549, %v1242, -inf
  %1255 = vmax.xlane.f32.xlu0 %v1254
  %v1256 = vpop.xlane.xlu0 %1255
  %v1257 = vsel %vm549, %v1243, -inf
  %1258 = vmax.xlane.f32.xlu0 %v1257
  %v1259 = vpop.xlane.xlu0 %1258
  %v1260 = vsel %vm549, %v1244, -inf
  %1261 = vmax.xlane.f32.xlu0 %v1260
  %v1262 = vpop.xlane.xlu0 %1261
  %v1263 = vsel %vm549, %v1245, -inf
  %1264 = vmax.xlane.f32.xlu0 %v1263
  %v1265 = vpop.xlane.xlu0 %1264
  %v1266 = vsel %vm549, %v1246, -inf
  %1267 = vmax.xlane.f32.xlu0 %v1266
  %v1268 = vpop.xlane.xlu0 %1267
  %v1269 = vsel %vm549, %v1247, -inf
  %1270 = vmax.xlane.f32.xlu0 %v1269
  %v1271 = vpop.xlane.xlu0 %1270
  %v1272 = vsub.f32 %v1240, %v1250
  %v1273 = vsub.f32 %v1241, %v1253
  %v1274 = vsub.f32 %v1242, %v1256
  %v1275 = vsub.f32 %v1243, %v1259
  %v1276 = vsub.f32 %v1244, %v1262
  %v1277 = vsub.f32 %v1245, %v1265
  %v1278 = vsub.f32 %v1246, %v1268
  %v1279 = vsub.f32 %v1247, %v1271
  %v1280 = vmul.f32 %v1272, 1.442695
  %v1281 = vpow.pop %v1280
  %v1282 = vmul.f32 %v1273, 1.442695
  %v1283 = vpow.pop %v1282
  %v1284 = vmul.f32 %v1274, 1.442695
  %v1285 = vpow.pop %v1284
  %v1286 = vmul.f32 %v1275, 1.442695
  %v1287 = vpow.pop %v1286
  %v1288 = vmul.f32 %v1276, 1.442695
  %v1289 = vpow.pop %v1288
  %v1290 = vmul.f32 %v1277, 1.442695
  %v1291 = vpow.pop %v1290
  %v1292 = vmul.f32 %v1278, 1.442695
  %v1293 = vpow.pop %v1292
  %v1294 = vmul.f32 %v1279, 1.442695
  %v1295 = vpow.pop %v1294
  %v1296 = vsel %vm549, %v1281, 0.0
  %1297 = vadd.xlane.f32.xlu0 %v1296
  %v1298 = vpop.xlane.xlu0 %1297
  %v1299 = vsel %vm549, %v1283, 0.0
  %1300 = vadd.xlane.f32.xlu0 %v1299
  %v1301 = vpop.xlane.xlu0 %1300
  %v1302 = vsel %vm549, %v1285, 0.0
  %1303 = vadd.xlane.f32.xlu0 %v1302
  %v1304 = vpop.xlane.xlu0 %1303
  %v1305 = vsel %vm549, %v1287, 0.0
  %1306 = vadd.xlane.f32.xlu0 %v1305
  %v1307 = vpop.xlane.xlu0 %1306
  %v1308 = vsel %vm549, %v1289, 0.0
  %1309 = vadd.xlane.f32.xlu0 %v1308
  %v1310 = vpop.xlane.xlu0 %1309
  %v1311 = vsel %vm549, %v1291, 0.0
  %1312 = vadd.xlane.f32.xlu0 %v1311
  %v1313 = vpop.xlane.xlu0 %1312
  %v1314 = vsel %vm549, %v1293, 0.0
  %1315 = vadd.xlane.f32.xlu0 %v1314
  %v1316 = vpop.xlane.xlu0 %1315
  %v1317 = vsel %vm549, %v1295, 0.0
  %1318 = vadd.xlane.f32.xlu0 %v1317
  %v1319 = vpop.xlane.xlu0 %1318
  %v1320 = vrcp.pop %v1298
  %v1321 = vrcp.pop %v1301
  %v1322 = vrcp.pop %v1304
  %v1323 = vrcp.pop %v1307
  %v1324 = vrcp.pop %v1310
  %v1325 = vrcp.pop %v1313
  %v1326 = vrcp.pop %v1316
  %v1327 = vrcp.pop %v1319
  %v1328 = vmul.f32 %v1281, %v1320
  %v1329 = vmul.f32 %v1283, %v1321
  %v1330 = vmul.f32 %v1285, %v1322
  %v1331 = vmul.f32 %v1287, %v1323
  %v1332 = vmul.f32 %v1289, %v1324
  %v1333 = vmul.f32 %v1291, %v1325
  %v1334 = vmul.f32 %v1293, %v1326
  %v1335 = vmul.f32 %v1295, %v1327
  %v1336 = vpack.c.bf16 %v1329, %v1328
  %v1337 = vpack.c.bf16 %v1331, %v1330
  %v1338 = vpack.c.bf16 %v1333, %v1332
  %v1339 = vpack.c.bf16 %v1335, %v1334
  %1340 = vrot.lane.b32.xlu0 %v1136, 64
  %v1341 = vpop.permute.xlu0 %1340
  %v1344 = vsel %vm549, %v1336, 0
  %v1347 = vsel %vm549, %v1337, 0
  %v1350 = vsel %vm549, %v1338, 0
  %v1353 = vsel %vm549, %v1339, 0
  %1355 = vmatprep.subr.bf16.mxu0 0
  %1356 = vmatpush1.bf16.msra.mxu0 0
  %1357 = vmatprep.subr.bf16.mxu0 0
  %1358 = vmatpush1.bf16.msra.mxu0 0
  %1359 = vmatprep.subr.bf16.mxu0 0
  %1360 = vmatpush1.bf16.msra.mxu0 0
  %1361 = vmatprep.subr.bf16.mxu0 0
  %1362 = vmatpush1.bf16.msra.mxu0 0
  %1363 = vmatprep.subr.bf16.mxu0 0
  %1364 = vmatpush1.bf16.msra.mxu0 0
  %1365 = vmatprep.subr.bf16.mxu0 0
  %1366 = vmatpush1.bf16.msra.mxu0 0
  %1367 = vmatprep.subr.bf16.mxu0 0
  %1368 = vmatpush1.bf16.msra.mxu0 0
  %1369 = vmatprep.subr.bf16.mxu0 0
  %1370 = vmatpush1.bf16.msra.mxu0 %v1341
  %1371 = vmatprep.subr.bf16.mxu0 0
  %1372 = vmatpush2.bf16.msra.mxu0 0
  %1373 = vmatprep.subr.bf16.mxu0 0
  %1374 = vmatpush2.bf16.msra.mxu0 0
  %1375 = vmatprep.subr.bf16.mxu0 0
  %1376 = vmatpush2.bf16.msra.mxu0 0
  %1377 = vmatprep.subr.bf16.mxu0 0
  %1378 = vmatpush2.bf16.msra.mxu0 0
  %1379 = vmatprep.subr.bf16.mxu0 0
  %1380 = vmatpush2.bf16.msra.mxu0 0
  %1381 = vmatprep.subr.bf16.mxu0 0
  %1382 = vmatpush2.bf16.msra.mxu0 0
  %1383 = vmatprep.subr.bf16.mxu0 0
  %1384 = vmatpush2.bf16.msra.mxu0 0
  %1385 = vmatprep.subr.bf16.mxu0 0
  %1386 = vmatpush2.bf16.msra.mxu0 0
  %1387 = vmatprep.mubr.bf16.mxu0 0
  %1388 = vmatmul.mubr.bf16.gmra.mxu0 %v1344
  %v1389 = vpop.f32.mrf.mxu0
  %v1390 = vadd.f32 0.0, %v1389
  %v1391 = vpop.f32.mrf.mxu0
  %v1392 = vpop.f32.mrf.mxu0
  %v1393 = vadd.f32 0.0, %v1392
  %v1394 = vpop.f32.mrf.mxu0
  %1395 = vmatprep.mubr.bf16.mxu0 0
  %1396 = vmatmul.mubr.bf16.gmra.mxu0 %v1347
  %v1397 = vpop.f32.mrf.mxu0
  %v1398 = vadd.f32 0.0, %v1397
  %v1399 = vpop.f32.mrf.mxu0
  %v1400 = vpop.f32.mrf.mxu0
  %v1401 = vadd.f32 0.0, %v1400
  %v1402 = vpop.f32.mrf.mxu0
  %1403 = vmatprep.mubr.bf16.mxu0 0
  %1404 = vmatmul.mubr.bf16.gmra.mxu0 %v1350
  %v1405 = vpop.f32.mrf.mxu0
  %v1406 = vadd.f32 0.0, %v1405
  %v1407 = vpop.f32.mrf.mxu0
  %v1408 = vpop.f32.mrf.mxu0
  %v1409 = vadd.f32 0.0, %v1408
  %v1410 = vpop.f32.mrf.mxu0
  %1411 = vmatprep.mubr.bf16.mxu0 0
  %1412 = vmatmul.mubr.bf16.gmra.mxu0 %v1353
  %v1413 = vpop.f32.mrf.mxu0
  %v1414 = vadd.f32 0.0, %v1413
  %v1415 = vpop.f32.mrf.mxu0
  %v1416 = vpop.f32.mrf.mxu0
  %v1417 = vadd.f32 0.0, %v1416
  %v1418 = vpop.f32.mrf.mxu0
  %1419 = vdwg.mxu0
  %v1420 = vsel %vm431, %v1390, 0.0
  %v1421 = vsel %vm431, %v1393, 0.0
  %v1422 = vsel %vm435, %v1398, 0.0
  %v1423 = vsel %vm435, %v1401, 0.0
  %v1424 = vadd.f32 %v1420, %v1422
  %v1425 = vadd.f32 %v1421, %v1423
  %v1426 = vsel %vm439, %v1406, 0.0
  %v1427 = vsel %vm439, %v1409, 0.0
  %v1428 = vadd.f32 %v1424, %v1426
  %v1429 = vadd.f32 %v1425, %v1427
  %v1430 = vsel %vm443, %v1414, 0.0
  %v1431 = vsel %vm443, %v1417, 0.0
  %v1432 = vadd.f32 %v1428, %v1430
  %v1433 = vadd.f32 %v1429, %v1431
  %v1434 = vpack.c.bf16 %v1433, %v1432
  %s1435 = scalar_lea.vmem %s10, 16
  %v1436 = vld [vmem:[%s1435] sm:$0xf]
  %v1437 = vld [vmem:[%s1435 + $0x4] sm:$0xf]
  %v1438 = vld [vmem:[%s1435 + $0x8] sm:$0xf]
  %v1439 = vld [vmem:[%s1435 + $0xc] sm:$0xf]
  %s1440 = scalar_lea.vmem %s11, 1
  %v1441 = vld [vmem:[%s1440] sm:$0x1]
  %v1443 = vlaneseq
  %v1444 = vshrl.u32 %v1443, 7
  %v1445 = vsub.s32 0, %v1444
  %v1446 = vrot.slane %v1441, %v1445
  %v1452 = vunpack.c.l.b16 %v1436
  %v1453 = vunpack.c.l.b16 %v1437
  %v1454 = vunpack.c.l.b16 %v1438
  %v1455 = vunpack.c.l.b16 %v1439
  %v1456 = vpack.c.b16 %v1453, %v1452
  %v1457 = vpack.c.b16 %v1455, %v1454
  %v1461 = vsel %vm303, %v1434, 0
  %1463 = vmatprep.subr.bf16.mxu0 0
  %1464 = vmatpush1.bf16.msra.mxu0 0
  %1465 = vmatprep.subr.bf16.mxu0 0
  %1466 = vmatpush1.bf16.msra.mxu0 0
  %1467 = vmatprep.subr.bf16.mxu0 0
  %1468 = vmatpush1.bf16.msra.mxu0 0
  %1469 = vmatprep.subr.bf16.mxu0 0
  %1470 = vmatpush1.bf16.msra.mxu0 0
  %1471 = vmatprep.subr.bf16.mxu0 0
  %1472 = vmatpush1.bf16.msra.mxu0 0
  %1473 = vmatprep.subr.bf16.mxu0 0
  %1474 = vmatpush1.bf16.msra.mxu0 0
  %1475 = vmatprep.subr.bf16.mxu0 0
  %1476 = vmatpush1.bf16.msra.mxu0 %v1457
  %1477 = vmatprep.subr.bf16.mxu0 0
  %1478 = vmatpush1.bf16.msra.mxu0 %v1456
  %1479 = vmatprep.subr.bf16.mxu0 0
  %1480 = vmatpush2.bf16.msra.mxu0 0
  %1481 = vmatprep.subr.bf16.mxu0 0
  %1482 = vmatpush2.bf16.msra.mxu0 0
  %1483 = vmatprep.subr.bf16.mxu0 0
  %1484 = vmatpush2.bf16.msra.mxu0 0
  %1485 = vmatprep.subr.bf16.mxu0 0
  %1486 = vmatpush2.bf16.msra.mxu0 0
  %1487 = vmatprep.subr.bf16.mxu0 0
  %1488 = vmatpush2.bf16.msra.mxu0 0
  %1489 = vmatprep.subr.bf16.mxu0 0
  %1490 = vmatpush2.bf16.msra.mxu0 0
  %1491 = vmatprep.subr.bf16.mxu0 0
  %1492 = vmatpush2.bf16.msra.mxu0 0
  %1493 = vmatprep.subr.bf16.mxu0 0
  %1494 = vmatpush2.bf16.msra.mxu0 0
  %1495 = vmatprep.mubr.bf16.mxu0 0
  %1496 = vmatmul.mubr.bf16.gmra.mxu0 %v1461
  %v1497 = vpop.f32.mrf.mxu0
  %v1498 = vadd.f32 %v1446, %v1497
  %v1499 = vpop.f32.mrf.mxu0
  %v1500 = vpop.f32.mrf.mxu0
  %v1501 = vadd.f32 %v1446, %v1500
  %v1502 = vpop.f32.mrf.mxu0
  %1503 = vdwg.mxu0
  %v1504 = vadd.f32 %v1498, %v1064
  %v1505 = vadd.f32 %v1501, %v1065
  %s1506 = scalar_lea.vmem %s12, 1
  %v1507 = vld [vmem:[%s1506] sm:$0x1]
  %s1508 = scalar_lea.vmem %s13, 1
  %v1509 = vld [vmem:[%s1508] sm:$0x1]
  %v1510 = vsel %vm303, %v1504, 0.0
  %1511 = vadd.xlane.f32.xlu0 %v1510
  %v1512 = vpop.xlane.xlu0 %1511
  %v1513 = vsel %vm303, %v1505, 0.0
  %1514 = vadd.xlane.f32.xlu0 %v1513
  %v1515 = vpop.xlane.xlu0 %1514
  %v1516 = vmul.f32 %v1512, %v310
  %v1517 = vmul.f32 %v1515, %v310
  %v1518 = vsub.f32 %v1504, %v1516
  %v1519 = vsub.f32 %v1505, %v1517
  %v1520 = vmul.f32 %v1518, %v1518
  %v1521 = vmul.f32 %v1519, %v1519
  %v1522 = vsel %vm303, %v1520, 0.0
  %1523 = vadd.xlane.f32.xlu0 %v1522
  %v1524 = vpop.xlane.xlu0 %1523
  %v1525 = vsel %vm303, %v1521, 0.0
  %1526 = vadd.xlane.f32.xlu0 %v1525
  %v1527 = vpop.xlane.xlu0 %1526
  %v1528 = vmul.f32 %v1524, %v310
  %v1529 = vmul.f32 %v1527, %v310
  %v1530 = vadd.f32 %v1528, 1e-12
  %v1531 = vadd.f32 %v1529, 1e-12
  %v1532 = vrsqrt.pop %v1530
  %v1533 = vrsqrt.pop %v1531
  %v1534 = vmul.f32 %v1518, %v1532
  %v1535 = vmul.f32 %v1519, %v1533
  %v1537 = vlaneseq
  %v1538 = vshrl.u32 %v1537, 7
  %v1539 = vsub.s32 0, %v1538
  %v1540 = vrot.slane %v1507, %v1539
  %v1542 = vmul.f32 %v1534, %v1540
  %v1543 = vmul.f32 %v1535, %v1540
  %v1545 = vlaneseq
  %v1546 = vshrl.u32 %v1545, 7
  %v1547 = vsub.s32 0, %v1546
  %v1548 = vrot.slane %v1509, %v1547
  %v1550 = vadd.f32 %v1542, %v1548
  %v1551 = vadd.f32 %v1543, %v1548
  %v1552 = vpack.c.bf16 %v1551, %v1550
  %s1553 = scalar_lea.vmem %s14, 16
  %v1554 = vld [vmem:[%s1553] sm:$0xf]
  %v1555 = vld [vmem:[%s1553 + $0x4] sm:$0xf]
  %v1556 = vld [vmem:[%s1553 + $0x8] sm:$0xf]
  %v1557 = vld [vmem:[%s1553 + $0xc] sm:$0xf]
  %s1558 = scalar_lea.vmem %s15, 1
  %v1559 = vld [vmem:[%s1558] sm:$0x1]
  %v1561 = vlaneseq
  %v1562 = vshrl.u32 %v1561, 7
  %v1563 = vsub.s32 0, %v1562
  %v1564 = vrot.slane %v1559, %v1563
  %v1570 = vunpack.c.l.b16 %v1554
  %v1571 = vunpack.c.l.b16 %v1555
  %v1572 = vunpack.c.l.b16 %v1556
  %v1573 = vunpack.c.l.b16 %v1557
  %v1574 = vpack.c.b16 %v1571, %v1570
  %v1575 = vpack.c.b16 %v1573, %v1572
  %v1579 = vsel %vm303, %v1552, 0
  %1581 = vmatprep.subr.bf16.mxu0 0
  %1582 = vmatpush1.bf16.msra.mxu0 0
  %1583 = vmatprep.subr.bf16.mxu0 0
  %1584 = vmatpush1.bf16.msra.mxu0 0
  %1585 = vmatprep.subr.bf16.mxu0 0
  %1586 = vmatpush1.bf16.msra.mxu0 0
  %1587 = vmatprep.subr.bf16.mxu0 0
  %1588 = vmatpush1.bf16.msra.mxu0 0
  %1589 = vmatprep.subr.bf16.mxu0 0
  %1590 = vmatpush1.bf16.msra.mxu0 0
  %1591 = vmatprep.subr.bf16.mxu0 0
  %1592 = vmatpush1.bf16.msra.mxu0 0
  %1593 = vmatprep.subr.bf16.mxu0 0
  %1594 = vmatpush1.bf16.msra.mxu0 %v1575
  %1595 = vmatprep.subr.bf16.mxu0 0
  %1596 = vmatpush1.bf16.msra.mxu0 %v1574
  %1597 = vmatprep.subr.bf16.mxu0 0
  %1598 = vmatpush2.bf16.msra.mxu0 0
  %1599 = vmatprep.subr.bf16.mxu0 0
  %1600 = vmatpush2.bf16.msra.mxu0 0
  %1601 = vmatprep.subr.bf16.mxu0 0
  %1602 = vmatpush2.bf16.msra.mxu0 0
  %1603 = vmatprep.subr.bf16.mxu0 0
  %1604 = vmatpush2.bf16.msra.mxu0 0
  %1605 = vmatprep.subr.bf16.mxu0 0
  %1606 = vmatpush2.bf16.msra.mxu0 0
  %1607 = vmatprep.subr.bf16.mxu0 0
  %1608 = vmatpush2.bf16.msra.mxu0 0
  %1609 = vmatprep.subr.bf16.mxu0 0
  %1610 = vmatpush2.bf16.msra.mxu0 0
  %1611 = vmatprep.subr.bf16.mxu0 0
  %1612 = vmatpush2.bf16.msra.mxu0 0
  %1613 = vmatprep.mubr.bf16.mxu0 0
  %1614 = vmatmul.mubr.bf16.gmra.mxu0 %v1579
  %v1615 = vpop.f32.mrf.mxu0
  %v1616 = vadd.f32 %v1564, %v1615
  %v1617 = vpop.f32.mrf.mxu0
  %v1618 = vpop.f32.mrf.mxu0
  %v1619 = vadd.f32 %v1564, %v1618
  %v1620 = vpop.f32.mrf.mxu0
  %1621 = vdwg.mxu0
  %v1622 = vmul.f32 %v1616, 0.5
  %v1623 = vmul.f32 %v1619, 0.5
  %v1624 = vmul.f32 %v1616, 0.044715
  %v1625 = vmul.f32 %v1619, 0.044715
  %v1626 = vmul.f32 %v1624, %v1616
  %v1627 = vmul.f32 %v1625, %v1619
  %v1628 = vmul.f32 %v1626, %v1616
  %v1629 = vmul.f32 %v1627, %v1619
  %v1630 = vadd.f32 %v1616, %v1628
  %v1631 = vadd.f32 %v1619, %v1629
  %v1632 = vmul.f32 %v1630, 0.7978846
  %v1633 = vmul.f32 %v1631, 0.7978846
  %v1634 = vtanh.pop %v1632
  %v1635 = vtanh.pop %v1633
  %v1636 = vadd.f32 %v1634, 1.0
  %v1637 = vadd.f32 %v1635, 1.0
  %v1638 = vmul.f32 %v1622, %v1636
  %v1639 = vmul.f32 %v1623, %v1637
  %v1640 = vpack.c.bf16 %v1639, %v1638
  %s1641 = scalar_lea.vmem %s16, 32
  %v1642 = vld [vmem:[%s1641] sm:$0xf]
  %v1643 = vld [vmem:[%s1641 + $0x4] sm:$0xf]
  %v1644 = vld [vmem:[%s1641 + $0x8] sm:$0xf]
  %v1645 = vld [vmem:[%s1641 + $0xc] sm:$0xf]
  %v1646 = vld [vmem:[%s1641 + $0x10] sm:$0xf]
  %v1647 = vld [vmem:[%s1641 + $0x14] sm:$0xf]
  %v1648 = vld [vmem:[%s1641 + $0x18] sm:$0xf]
  %v1649 = vld [vmem:[%s1641 + $0x1c] sm:$0xf]
  %s1650 = scalar_lea.vmem %s17, 1
  %v1651 = vld [vmem:[%s1650] sm:$0x1]
  %v1653 = vlaneseq
  %v1654 = vshrl.u32 %v1653, 7
  %v1655 = vsub.s32 0, %v1654
  %v1656 = vrot.slane %v1651, %v1655
  %v1666 = vunpack.c.l.b16 %v1642
  %v1667 = vunpack.c.l.b16 %v1643
  %v1668 = vunpack.c.l.b16 %v1644
  %v1669 = vunpack.c.l.b16 %v1645
  %v1670 = vunpack.c.l.b16 %v1646
  %v1671 = vunpack.c.l.b16 %v1647
  %v1672 = vunpack.c.l.b16 %v1648
  %v1673 = vunpack.c.l.b16 %v1649
  %v1674 = vpack.c.b16 %v1667, %v1666
  %v1675 = vpack.c.b16 %v1669, %v1668
  %v1676 = vpack.c.b16 %v1671, %v1670
  %v1677 = vpack.c.b16 %v1673, %v1672
  %v1683 = vsel %vm158, %v1640, 0
  %1685 = vmatprep.subr.bf16.mxu0 0
  %1686 = vmatpush1.bf16.msra.mxu0 0
  %1687 = vmatprep.subr.bf16.mxu0 0
  %1688 = vmatpush1.bf16.msra.mxu0 0
  %1689 = vmatprep.subr.bf16.mxu0 0
  %1690 = vmatpush1.bf16.msra.mxu0 0
  %1691 = vmatprep.subr.bf16.mxu0 0
  %1692 = vmatpush1.bf16.msra.mxu0 0
  %1693 = vmatprep.subr.bf16.mxu0 0
  %1694 = vmatpush1.bf16.msra.mxu0 %v1677
  %1695 = vmatprep.subr.bf16.mxu0 0
  %1696 = vmatpush1.bf16.msra.mxu0 %v1676
  %1697 = vmatprep.subr.bf16.mxu0 0
  %1698 = vmatpush1.bf16.msra.mxu0 %v1675
  %1699 = vmatprep.subr.bf16.mxu0 0
  %1700 = vmatpush1.bf16.msra.mxu0 %v1674
  %1701 = vmatprep.subr.bf16.mxu0 0
  %1702 = vmatpush2.bf16.msra.mxu0 0
  %1703 = vmatprep.subr.bf16.mxu0 0
  %1704 = vmatpush2.bf16.msra.mxu0 0
  %1705 = vmatprep.subr.bf16.mxu0 0
  %1706 = vmatpush2.bf16.msra.mxu0 0
  %1707 = vmatprep.subr.bf16.mxu0 0
  %1708 = vmatpush2.bf16.msra.mxu0 0
  %1709 = vmatprep.subr.bf16.mxu0 0
  %1710 = vmatpush2.bf16.msra.mxu0 0
  %1711 = vmatprep.subr.bf16.mxu0 0
  %1712 = vmatpush2.bf16.msra.mxu0 0
  %1713 = vmatprep.subr.bf16.mxu0 0
  %1714 = vmatpush2.bf16.msra.mxu0 0
  %1715 = vmatprep.subr.bf16.mxu0 0
  %1716 = vmatpush2.bf16.msra.mxu0 0
  %1717 = vmatprep.mubr.bf16.mxu0 0
  %1718 = vmatmul.mubr.bf16.gmra.mxu0 %v1683
  %v1719 = vpop.f32.mrf.mxu0
  %v1720 = vadd.f32 %v1656, %v1719
  %v1721 = vpop.f32.mrf.mxu0
  %v1722 = vpop.f32.mrf.mxu0
  %v1723 = vadd.f32 %v1656, %v1722
  %v1724 = vpop.f32.mrf.mxu0
  %1725 = vdwg.mxu0
  %v1726 = vadd.f32 %v1720, %v1550
  %v1727 = vadd.f32 %v1723, %v1551
  %s1728 = scalar_lea.vmem %s18, 1
  %v1729 = vld [vmem:[%s1728] sm:$0x1]
  %s1730 = scalar_lea.vmem %s19, 1
  %v1731 = vld [vmem:[%s1730] sm:$0x1]
  %v1732 = vsel %vm303, %v1726, 0.0
  %1733 = vadd.xlane.f32.xlu0 %v1732
  %v1734 = vpop.xlane.xlu0 %1733
  %v1735 = vsel %vm303, %v1727, 0.0
  %1736 = vadd.xlane.f32.xlu0 %v1735
  %v1737 = vpop.xlane.xlu0 %1736
  %v1738 = vmul.f32 %v1734, %v310
  %v1739 = vmul.f32 %v1737, %v310
  %v1740 = vsub.f32 %v1726, %v1738
  %v1741 = vsub.f32 %v1727, %v1739
  %v1742 = vmul.f32 %v1740, %v1740
  %v1743 = vmul.f32 %v1741, %v1741
  %v1744 = vsel %vm303, %v1742, 0.0
  %1745 = vadd.xlane.f32.xlu0 %v1744
  %v1746 = vpop.xlane.xlu0 %1745
  %v1747 = vsel %vm303, %v1743, 0.0
  %1748 = vadd.xlane.f32.xlu0 %v1747
  %v1749 = vpop.xlane.xlu0 %1748
  %v1750 = vmul.f32 %v1746, %v310
  %v1751 = vmul.f32 %v1749, %v310
  %v1752 = vadd.f32 %v1750, 1e-12
  %v1753 = vadd.f32 %v1751, 1e-12
  %v1754 = vrsqrt.pop %v1752
  %v1755 = vrsqrt.pop %v1753
  %v1756 = vmul.f32 %v1740, %v1754
  %v1757 = vmul.f32 %v1741, %v1755
  %v1759 = vlaneseq
  %v1760 = vshrl.u32 %v1759, 7
  %v1761 = vsub.s32 0, %v1760
  %v1762 = vrot.slane %v1729, %v1761
  %v1764 = vmul.f32 %v1756, %v1762
  %v1765 = vmul.f32 %v1757, %v1762
  %v1767 = vlaneseq
  %v1768 = vshrl.u32 %v1767, 7
  %v1769 = vsub.s32 0, %v1768
  %v1770 = vrot.slane %v1731, %v1769
  %v1772 = vadd.f32 %v1764, %v1770
  %v1773 = vadd.f32 %v1765, %v1770
  %v1774 = vlaneseq
  %v1775 = vshrl.u32 %v1774, 7
  %v1776 = vmul.u32 %v1775, 8
  %vm1777 = vcmp.eq.s32.totalorder %v79, %v1776
  %vm1778 = vcmp.lt.s32.totalorder %v1775, 2
  %v1779 = vsel %vm1778, 1, 0
  %vm1780 = vcmp.eq.s32.totalorder %v1779, 1
  %vm1781 = vmand %vm1777, %vm1780
  %v1782 = vsel %vm1781, 1, 0
  %v1783 = vcvt.s32.f32 %v1782
  %v1784 = vpack.c.bf16 %v1783, %v1783
  %v1785 = vpack.c.bf16 %v1773, %v1772
  %v1787 = vsel %vm549, %v1784, 0
  %1789 = vmatprep.subr.bf16.mxu0 0
  %1790 = vmatpush1.bf16.msra.mxu0 0
  %1791 = vmatprep.subr.bf16.mxu0 0
  %1792 = vmatpush1.bf16.msra.mxu0 0
  %1793 = vmatprep.subr.bf16.mxu0 0
  %1794 = vmatpush1.bf16.msra.mxu0 0
  %1795 = vmatprep.subr.bf16.mxu0 0
  %1796 = vmatpush1.bf16.msra.mxu0 0
  %1797 = vmatprep.subr.bf16.mxu0 0
  %1798 = vmatpush1.bf16.msra.mxu0 0
  %1799 = vmatprep.subr.bf16.mxu0 0
  %1800 = vmatpush1.bf16.msra.mxu0 0
  %1801 = vmatprep.subr.bf16.mxu0 0
  %1802 = vmatpush1.bf16.msra.mxu0 0
  %1803 = vmatprep.subr.bf16.mxu0 0
  %1804 = vmatpush1.bf16.msra.mxu0 %v1785
  %1805 = vmatprep.subr.bf16.mxu0 0
  %1806 = vmatpush2.bf16.msra.mxu0 0
  %1807 = vmatprep.subr.bf16.mxu0 0
  %1808 = vmatpush2.bf16.msra.mxu0 0
  %1809 = vmatprep.subr.bf16.mxu0 0
  %1810 = vmatpush2.bf16.msra.mxu0 0
  %1811 = vmatprep.subr.bf16.mxu0 0
  %1812 = vmatpush2.bf16.msra.mxu0 0
  %1813 = vmatprep.subr.bf16.mxu0 0
  %1814 = vmatpush2.bf16.msra.mxu0 0
  %1815 = vmatprep.subr.bf16.mxu0 0
  %1816 = vmatpush2.bf16.msra.mxu0 0
  %1817 = vmatprep.subr.bf16.mxu0 0
  %1818 = vmatpush2.bf16.msra.mxu0 0
  %1819 = vmatprep.subr.bf16.mxu0 0
  %1820 = vmatpush2.bf16.msra.mxu0 0
  %1821 = vmatprep.mubr.bf16.mxu0 0
  %1822 = vmatmul.mubr.bf16.gmra.mxu0 %v1787
  %v1823 = vpop.f32.mrf.mxu0
  %v1824 = vadd.f32 0.0, %v1823
  %v1825 = vpop.f32.mrf.mxu0
  %v1826 = vpop.f32.mrf.mxu0
  %v1827 = vpop.f32.mrf.mxu0
  %1828 = vdwg.mxu0
  %v1829 = vpack.c.bf16 %v1824, %v1824
  %v1830 = vld [vmem:[%s20] sm:$0xf]
  %v1831 = vld [vmem:[%s20 + $0x4] sm:$0xf]
  %v1832 = vld [vmem:[%s20 + $0x8] sm:$0xf]
  %v1833 = vld [vmem:[%s20 + $0xc] sm:$0xf]
  %v1834 = vld [vmem:[%s21] sm:$0x1]
  %v1836 = vlaneseq
  %v1837 = vshrl.u32 %v1836, 7
  %v1838 = vsub.s32 0, %v1837
  %v1839 = vrot.slane %v1834, %v1838
  %v1845 = vunpack.c.l.b16 %v1830
  %v1846 = vunpack.c.l.b16 %v1831
  %v1847 = vunpack.c.l.b16 %v1832
  %v1848 = vunpack.c.l.b16 %v1833
  %v1849 = vpack.c.b16 %v1846, %v1845
  %v1850 = vpack.c.b16 %v1848, %v1847
  %v1854 = vsel %vm303, %v1829, 0
  %1856 = vmatprep.subr.bf16.mxu0 0
  %1857 = vmatpush1.bf16.msra.mxu0 0
  %1858 = vmatprep.subr.bf16.mxu0 0
  %1859 = vmatpush1.bf16.msra.mxu0 0
  %1860 = vmatprep.subr.bf16.mxu0 0
  %1861 = vmatpush1.bf16.msra.mxu0 0
  %1862 = vmatprep.subr.bf16.mxu0 0
  %1863 = vmatpush1.bf16.msra.mxu0 0
  %1864 = vmatprep.subr.bf16.mxu0 0
  %1865 = vmatpush1.bf16.msra.mxu0 0
  %1866 = vmatprep.subr.bf16.mxu0 0
  %1867 = vmatpush1.bf16.msra.mxu0 0
  %1868 = vmatprep.subr.bf16.mxu0 0
  %1869 = vmatpush1.bf16.msra.mxu0 %v1850
  %1870 = vmatprep.subr.bf16.mxu0 0
  %1871 = vmatpush1.bf16.msra.mxu0 %v1849
  %1872 = vmatprep.subr.bf16.mxu0 0
  %1873 = vmatpush2.bf16.msra.mxu0 0
  %1874 = vmatprep.subr.bf16.mxu0 0
  %1875 = vmatpush2.bf16.msra.mxu0 0
  %1876 = vmatprep.subr.bf16.mxu0 0
  %1877 = vmatpush2.bf16.msra.mxu0 0
  %1878 = vmatprep.subr.bf16.mxu0 0
  %1879 = vmatpush2.bf16.msra.mxu0 0
  %1880 = vmatprep.subr.bf16.mxu0 0
  %1881 = vmatpush2.bf16.msra.mxu0 0
  %1882 = vmatprep.subr.bf16.mxu0 0
  %1883 = vmatpush2.bf16.msra.mxu0 0
  %1884 = vmatprep.subr.bf16.mxu0 0
  %1885 = vmatpush2.bf16.msra.mxu0 0
  %1886 = vmatprep.subr.bf16.mxu0 0
  %1887 = vmatpush2.bf16.msra.mxu0 0
  %1888 = vmatprep.mubr.bf16.mxu0 0
  %1889 = vmatmul.mubr.bf16.gmra.mxu0 %v1854
  %v1890 = vpop.f32.mrf.mxu0
  %v1891 = vadd.f32 %v1839, %v1890
  %v1892 = vpop.f32.mrf.mxu0
  %v1893 = vpop.f32.mrf.mxu0
  %v1894 = vpop.f32.mrf.mxu0
  %1895 = vdwg.mxu0
  %v1896 = vtanh.pop %v1891
  %v1897 = vpack.c.bf16 %v1896, %v1896
  %v1898 = vld [vmem:[%s22] sm:$0xf]
  %v1899 = vld [vmem:[%s22 + $0x4] sm:$0xf]
  %v1900 = vld [vmem:[%s22 + $0x8] sm:$0xf]
  %v1901 = vld [vmem:[%s22 + $0xc] sm:$0xf]
  %v1902 = vld [vmem:[%s23] sm:$0x1]
  %v1904 = vlaneseq
  %v1905 = vshrl.u32 %v1904, 7
  %v1906 = vsub.s32 0, %v1905
  %v1907 = vrot.slane %v1902, %v1906
  %v1913 = vunpack.c.l.b16 %v1898
  %v1914 = vunpack.c.l.b16 %v1899
  %v1915 = vunpack.c.l.b16 %v1900
  %v1916 = vunpack.c.l.b16 %v1901
  %v1917 = vpack.c.b16 %v1914, %v1913
  %v1918 = vpack.c.b16 %v1916, %v1915
  %v1922 = vsel %vm303, %v1897, 0
  %1924 = vmatprep.subr.bf16.mxu0 0
  %1925 = vmatpush1.bf16.msra.mxu0 0
  %1926 = vmatprep.subr.bf16.mxu0 0
  %1927 = vmatpush1.bf16.msra.mxu0 0
  %1928 = vmatprep.subr.bf16.mxu0 0
  %1929 = vmatpush1.bf16.msra.mxu0 0
  %1930 = vmatprep.subr.bf16.mxu0 0
  %1931 = vmatpush1.bf16.msra.mxu0 0
  %1932 = vmatprep.subr.bf16.mxu0 0
  %1933 = vmatpush1.bf16.msra.mxu0 0
  %1934 = vmatprep.subr.bf16.mxu0 0
  %1935 = vmatpush1.bf16.msra.mxu0 0
  %1936 = vmatprep.subr.bf16.mxu0 0
  %1937 = vmatpush1.bf16.msra.mxu0 %v1918
  %1938 = vmatprep.subr.bf16.mxu0 0
  %1939 = vmatpush1.bf16.msra.mxu0 %v1917
  %1940 = vmatprep.subr.bf16.mxu0 0
  %1941 = vmatpush2.bf16.msra.mxu0 0
  %1942 = vmatprep.subr.bf16.mxu0 0
  %1943 = vmatpush2.bf16.msra.mxu0 0
  %1944 = vmatprep.subr.bf16.mxu0 0
  %1945 = vmatpush2.bf16.msra.mxu0 0
  %1946 = vmatprep.subr.bf16.mxu0 0
  %1947 = vmatpush2.bf16.msra.mxu0 0
  %1948 = vmatprep.subr.bf16.mxu0 0
  %1949 = vmatpush2.bf16.msra.mxu0 0
  %1950 = vmatprep.subr.bf16.mxu0 0
  %1951 = vmatpush2.bf16.msra.mxu0 0
  %1952 = vmatprep.subr.bf16.mxu0 0
  %1953 = vmatpush2.bf16.msra.mxu0 0
  %1954 = vmatprep.subr.bf16.mxu0 0
  %1955 = vmatpush2.bf16.msra.mxu0 0
  %1956 = vmatprep.mubr.bf16.mxu0 0
  %1957 = vmatmul.mubr.bf16.gmra.mxu0 %v1922
  %v1958 = vpop.f32.mrf.mxu0
  %v1959 = vadd.f32 %v1907, %v1958
  %v1960 = vpop.f32.mrf.mxu0
  %v1961 = vpop.f32.mrf.mxu0
  %v1962 = vpop.f32.mrf.mxu0
  %1963 = vdwg.mxu0
  %1964 = vst [vmem:[%s24] sm:$0xff] %v1959
  // Predicated region
  $region98: #{_lambda_.1} parent=0 // pred_check
    _
  $region99: #{_lambda_.1} parent=0 // pred_check_branch
    %1966 = sbr.rel (0) target = $region101
  $region100: #{_lambda_.1} parent=0 // pred_region
    _
  $region101: #{_lambda_.1} parent=0 // pred_fallthru
    _
  // Predicated region
  $region102: #{_lambda_.1} parent=0 // pred_check
    _
  $region103: #{_lambda_.1} parent=0 // pred_check_branch
    %1968 = sbr.rel (0) target = $region105
  $region104: #{_lambda_.1} parent=0 // pred_region
    _
  $region105: #{_lambda_.1} parent=0 // pred_fallthru
    _

</llo_original>
